<compile_context>
chip_gen: v5e
topology: v5e:2x2
jax: 0.10.0
libtpu: 0.0.40
codegen_flags: <defaults>
</compile_context>

<pallas_src>
import numpy as np
import jax
import jax.numpy as jnp
from jax import lax
from jax.experimental import pallas as pl
from jax.experimental.pallas import tpu as pltpu

HIDDEN = 64
N_LAYER = 2    # module hard-codes n_layer = 2
BBLK = 8       # batch rows per grid step (sublane tile)


def lstm_kernel(xg0_ref,    # (T, BBLK, 4H) precomputed x_t*W_ih0 + b0, gate order [i,f,o,g]
                whh0_ref,   # (H, 4H)   layer-0 recurrent weights (transposed, reordered)
                w1_ref,     # (2H, 4H)  [W_ih1^T ; W_hh1^T] stacked (reordered)
                b1_ref,     # (1, 4H)   b_ih1 + b_hh1 (reordered)
                wout_ref,   # (1, H)    Linear weight
                bout_ref,   # (1, 1)    Linear bias
                out_ref,    # (T, BBLK)
                h1_hist):   # VMEM scratch (T, BBLK, H)
    H = HIDDEN
    T, Bblk = out_ref.shape

    # Loop-invariant loads / broadcasts hoisted out of the recurrence.
    whh0 = whh0_ref[...]                                    # (H, 4H)
    w1 = w1_ref[...]                                        # (2H, 4H)
    b1 = jnp.broadcast_to(b1_ref[...], (Bblk, 4 * H))       # (BBLK, 4H)

    def cell(gates, c):
        # gate columns are [i | f | o | g]: one sigmoid over 3H cols, one tanh over H.
        sig = jax.nn.sigmoid(gates[:, :3 * H])
        g = jnp.tanh(gates[:, 3 * H:])
        c_new = sig[:, H:2 * H] * c + sig[:, :H] * g
        h_new = sig[:, 2 * H:3 * H] * jnp.tanh(c_new)
        return h_new, c_new

    z = jnp.zeros((Bblk, H), jnp.float32)

    def step(t, carry):
        h0, c0, h1, c1 = carry
        # ---- layer 0: input+bias contribution precomputed in the wrapper ----
        gates0 = xg0_ref[t] + jnp.dot(h0, whh0, preferred_element_type=jnp.float32)
        h0, c0 = cell(gates0, c0)
        # ---- layer 1: single fused (BBLK, 2H) @ (2H, 4H) matmul ----
        h01 = jnp.concatenate([h0, h1], axis=-1)            # (BBLK, 2H)
        gates1 = jnp.dot(h01, w1, preferred_element_type=jnp.float32) + b1
        h1, c1 = cell(gates1, c1)
        # Stash h1; the output projection is done once after the loop.
        h1_hist[t] = h1
        return (h0, c0, h1, c1)

    lax.fori_loop(0, T, step, (z, z, z, z), unroll=True)

    # Output Linear(64 -> 1) for all timesteps at once (lane reduction), bulk store.
    y = jnp.sum(h1_hist[...] * wout_ref[...][None, :, :], axis=-1) + bout_ref[...]
    out_ref[...] = y.astype(out_ref.dtype)


def _reorder_gates(w):
    """Permute PyTorch gate order [i, f, g, o] -> [i, f, o, g] along leading 4H axis."""
    H = HIDDEN
    return jnp.concatenate([w[:2 * H], w[3 * H:], w[2 * H:3 * H]], axis=0)


def lstm_forward(x, params):
    """x: (B, T, 1) float32 -> (B, T, 1) float32 (PyTorch lstm module forward)."""
    B, T, _ = x.shape
    H = HIDDEN
    H4 = 4 * H
    (wih0, whh0, bih0, bhh0, wih1, whh1, bih1, bhh1, wout, bout) = params

    # Reorder gates to [i, f, o, g] and pre-transpose recurrent weights.
    wih0_r = _reorder_gates(wih0)                                   # (4H, 1)
    whh0_t = _reorder_gates(whh0).T                                 # (H, 4H)
    b0_r = _reorder_gates((bih0 + bhh0)[:, None])[:, 0]             # (4H,)
    w1 = jnp.concatenate([_reorder_gates(wih1).T,
                          _reorder_gates(whh1).T], axis=0)          # (2H, 4H)
    b1_r = _reorder_gates((bih1 + bhh1)[:, None])[:, 0]             # (4H,)

    # Pad batch to a multiple of BBLK and split into chunks (leading grid axis).
    n_chunks = -(-B // BBLK)
    Bp = n_chunks * BBLK
    x_p = jnp.pad(x, ((0, Bp - B), (0, 0), (0, 0)))

    # Precompute layer-0 input contribution for every timestep (input_size == 1, so
    # x @ W_ih0^T is a broadcast multiply); fold both layer-0 biases in.
    xg0 = x_p * wih0_r[:, 0][None, None, :] + b0_r[None, None, :]   # (Bp, T, 4H)
    xg0 = xg0.reshape(n_chunks, BBLK, T, H4).transpose(0, 2, 1, 3)  # (nc, T, BBLK, 4H)

    out_c = pl.pallas_call(
        lstm_kernel,
        out_shape=jax.ShapeDtypeStruct((n_chunks, T, BBLK), jnp.float32),
        grid=(n_chunks,),
        in_specs=[
            pl.BlockSpec((None, T, BBLK, H4), lambda b: (b, 0, 0, 0)),
            pl.BlockSpec((H, H4), lambda b: (0, 0)),
            pl.BlockSpec((2 * H, H4), lambda b: (0, 0)),
            pl.BlockSpec((1, H4), lambda b: (0, 0)),
            pl.BlockSpec((1, H), lambda b: (0, 0)),
            pl.BlockSpec((1, 1), lambda b: (0, 0)),
        ],
        out_specs=pl.BlockSpec((None, T, BBLK), lambda b: (b, 0, 0)),
        scratch_shapes=[pltpu.VMEM((T, BBLK, H), jnp.float32)],
        compiler_params=pltpu.CompilerParams(
            dimension_semantics=("parallel",)),
    )(xg0, whh0_t, w1, b1_r[None, :], wout, bout[None, :])

    # (n_chunks, T, BBLK) -> (Bp, T) -> (B, T, 1)
    out = out_c.transpose(0, 2, 1).reshape(Bp, T)[:B]
    return out[..., None]


def lstm_ref(x, params):
    """Pure-JAX reference matching PyTorch nn.LSTM + nn.Linear semantics."""
    wih0, whh0, bih0, bhh0, wih1, whh1, bih1, bhh1, wout, bout = params
    B, T, _ = x.shape
    H = HIDDEN

    def cell(w_ih, w_hh, b, x_t, h, c):
        g = x_t @ w_ih.T + h @ w_hh.T + b
        i = jax.nn.sigmoid(g[:, :H])
        f = jax.nn.sigmoid(g[:, H:2 * H])
        gg = jnp.tanh(g[:, 2 * H:3 * H])
        o = jax.nn.sigmoid(g[:, 3 * H:])
        c = f * c + i * gg
        h = o * jnp.tanh(c)
        return h, c

    def step(carry, x_t):
        h0, c0, h1, c1 = carry
        h0, c0 = cell(wih0, whh0, bih0 + bhh0, x_t, h0, c0)
        h1, c1 = cell(wih1, whh1, bih1 + bhh1, h0, h1, c1)
        y = h1 @ wout.T + bout
        return (h0, c0, h1, c1), y

    init = tuple(jnp.zeros((B, H), jnp.float32) for _ in range(4))
    _, ys = lax.scan(step, init, jnp.transpose(x, (1, 0, 2)))
    return jnp.transpose(ys, (1, 0, 2))


if __name__ == "__main__":
    B, T, H = 2, 8, HIDDEN
    key = jax.random.PRNGKey(0)
    keys = jax.random.split(key, 11)
    k = 1.0 / np.sqrt(H)  # PyTorch default uniform init range

    def u(kk, shape):
        return jax.random.uniform(kk, shape, jnp.float32, -k, k)

    # Deterministic synthetic parameters (shapes match nn.LSTM(1,64,2) + nn.Linear(64,1))
    wih0 = u(keys[0], (4 * H, 1))
    whh0 = u(keys[1], (4 * H, H))
    bih0 = u(keys[2], (4 * H,))
    bhh0 = u(keys[3], (4 * H,))
    wih1 = u(keys[4], (4 * H, H))
    whh1 = u(keys[5], (4 * H, H))
    bih1 = u(keys[6], (4 * H,))
    bhh1 = u(keys[7], (4 * H,))
    wout = u(keys[8], (1, H))
    bout = u(keys[9], (1,))
    params = (wih0, whh0, bih0, bhh0, wih1, whh1, bih1, bhh1, wout, bout)

    x = jax.random.normal(keys[10], (B, T, 1), jnp.float32)

    out = jax.block_until_ready(lstm_forward(x, params))
    ref = jax.block_until_ready(lstm_ref(x, params))
    np.testing.assert_allclose(np.asarray(out), np.asarray(ref), rtol=2e-5, atol=2e-5)
    assert out.shape == (B, T, 1)
    print("KERNEL_OK")
</pallas_src>

<mosaic_0001>
module attributes {stable_mosaic.version = 11 : i64} {
  func.func @lstm_kernel(%arg0: i32, %arg1: memref<1x8x8x256xf32, #tpu.memory_space<vmem>>, %arg2: memref<64x256xf32, #tpu.memory_space<vmem>>, %arg3: memref<128x256xf32, #tpu.memory_space<vmem>>, %arg4: memref<1x256xf32, #tpu.memory_space<vmem>>, %arg5: memref<1x64xf32, #tpu.memory_space<vmem>>, %arg6: memref<1x1xf32, #tpu.memory_space<vmem>>, %arg7: memref<1x8x8xf32, #tpu.memory_space<vmem>>, %arg8: memref<8x8x64xf32, #tpu.memory_space<vmem>>) attributes {dimension_semantics = [#tpu.dimension_semantics<parallel>], iteration_bounds = array<i64: 1>, scalar_prefetch = 0 : i64, scratch_operands = 1 : i64, tpu.core_type = #tpu.core_type<tc>, window_params = [{transform_indices = @transform_0, window_bounds = array<i64: 1, 8, 8, 256>}, {pipeline_mode = #tpu.pipeline_mode<synchronous>, transform_indices = @transform_1, window_bounds = array<i64: 64, 256>}, {pipeline_mode = #tpu.pipeline_mode<synchronous>, transform_indices = @transform_2, window_bounds = array<i64: 128, 256>}, {pipeline_mode = #tpu.pipeline_mode<synchronous>, transform_indices = @transform_3, window_bounds = array<i64: 1, 256>}, {pipeline_mode = #tpu.pipeline_mode<synchronous>, transform_indices = @transform_4, window_bounds = array<i64: 1, 64>}, {pipeline_mode = #tpu.pipeline_mode<synchronous>, transform_indices = @transform_5, window_bounds = array<i64: 1, 1>}, {transform_indices = @transform_6, window_bounds = array<i64: 1, 8, 8>}]} {
    %c0 = arith.constant 0 : index
    %c0_0 = arith.constant 0 : index
    %0 = vector.load %arg2[%c0, %c0_0] : memref<64x256xf32, #tpu.memory_space<vmem>>, vector<64x256xf32>
    %c0_1 = arith.constant 0 : index
    %c0_2 = arith.constant 0 : index
    %1 = vector.load %arg3[%c0_1, %c0_2] : memref<128x256xf32, #tpu.memory_space<vmem>>, vector<128x256xf32>
    %c0_3 = arith.constant 0 : index
    %c0_4 = arith.constant 0 : index
    %2 = vector.load %arg4[%c0_3, %c0_4] : memref<1x256xf32, #tpu.memory_space<vmem>>, vector<1x256xf32>
    %3 = vector.shape_cast %2 : vector<1x256xf32> to vector<1x256xf32>
    %4 = vector.broadcast %3 : vector<1x256xf32> to vector<8x256xf32>
    %cst = arith.constant 0.000000e+00 : f32
    %5 = vector.broadcast %cst : f32 to vector<8x64xf32>
    %c0_i32 = arith.constant 0 : i32
    %c0_5 = arith.constant 0 : index
    %6 = arith.index_cast %c0_i32 : i32 to index
    %c0_6 = arith.constant 0 : index
    %c0_7 = arith.constant 0 : index
    %7 = vector.load %arg1[%c0_5, %6, %c0_6, %c0_7] : memref<1x8x8x256xf32, #tpu.memory_space<vmem>>, vector<1x1x8x256xf32>
    %8 = vector.shape_cast %7 : vector<1x1x8x256xf32> to vector<8x256xf32>
    %cst_8 = arith.constant dense<0.000000e+00> : vector<8x256xf32>
    %9 = tpu.matmul %5, %0, %cst_8 {dimension_numbers = #tpu.dot_dimension_numbers<[1], [0], [0], [1], [0, 0, 1, 1], [], []>} : vector<8x64xf32>, vector<64x256xf32>, vector<8x256xf32> -> vector<8x256xf32>
    %10 = arith.addf %8, %9 : vector<8x256xf32>
    %11 = vector.extract_strided_slice %10 {offsets = [0, 0], sizes = [8, 192], strides = [1, 1]} : vector<8x256xf32> to vector<8x192xf32>
    %12 = arith.negf %11 : vector<8x192xf32>
    %13 = math.exp %12 : vector<8x192xf32>
    %cst_9 = arith.constant 1.000000e+00 : f32
    %14 = vector.broadcast %cst_9 : f32 to vector<8x192xf32>
    %15 = arith.addf %14, %13 : vector<8x192xf32>
    %16 = arith.divf %14, %15 : vector<8x192xf32>
    %17 = vector.extract_strided_slice %10 {offsets = [0, 192], sizes = [8, 64], strides = [1, 1]} : vector<8x256xf32> to vector<8x64xf32>
    %18 = math.tanh %17 : vector<8x64xf32>
    %19 = vector.extract_strided_slice %16 {offsets = [0, 64], sizes = [8, 64], strides = [1, 1]} : vector<8x192xf32> to vector<8x64xf32>
    %20 = arith.mulf %19, %5 : vector<8x64xf32>
    %21 = vector.extract_strided_slice %16 {offsets = [0, 0], sizes = [8, 64], strides = [1, 1]} : vector<8x192xf32> to vector<8x64xf32>
    %22 = arith.mulf %21, %18 : vector<8x64xf32>
    %23 = arith.addf %20, %22 : vector<8x64xf32>
    %24 = vector.extract_strided_slice %16 {offsets = [0, 128], sizes = [8, 64], strides = [1, 1]} : vector<8x192xf32> to vector<8x64xf32>
    %25 = math.tanh %23 : vector<8x64xf32>
    %26 = arith.mulf %24, %25 : vector<8x64xf32>
    %27 = tpu.concatenate %26, %5 in 1 : vector<8x64xf32>, vector<8x64xf32> -> vector<8x128xf32>
    %cst_10 = arith.constant dense<0.000000e+00> : vector<8x256xf32>
    %28 = tpu.matmul %27, %1, %cst_10 {dimension_numbers = #tpu.dot_dimension_numbers<[1], [0], [0], [1], [0, 0, 1, 1], [], []>} : vector<8x128xf32>, vector<128x256xf32>, vector<8x256xf32> -> vector<8x256xf32>
    %29 = arith.addf %28, %4 : vector<8x256xf32>
    %30 = vector.extract_strided_slice %29 {offsets = [0, 0], sizes = [8, 192], strides = [1, 1]} : vector<8x256xf32> to vector<8x192xf32>
    %31 = arith.negf %30 : vector<8x192xf32>
    %32 = math.exp %31 : vector<8x192xf32>
    %cst_11 = arith.constant 1.000000e+00 : f32
    %33 = vector.broadcast %cst_11 : f32 to vector<8x192xf32>
    %34 = arith.addf %33, %32 : vector<8x192xf32>
    %35 = arith.divf %33, %34 : vector<8x192xf32>
    %36 = vector.extract_strided_slice %29 {offsets = [0, 192], sizes = [8, 64], strides = [1, 1]} : vector<8x256xf32> to vector<8x64xf32>
    %37 = math.tanh %36 : vector<8x64xf32>
    %38 = vector.extract_strided_slice %35 {offsets = [0, 64], sizes = [8, 64], strides = [1, 1]} : vector<8x192xf32> to vector<8x64xf32>
    %39 = arith.mulf %38, %5 : vector<8x64xf32>
    %40 = vector.extract_strided_slice %35 {offsets = [0, 0], sizes = [8, 64], strides = [1, 1]} : vector<8x192xf32> to vector<8x64xf32>
    %41 = arith.mulf %40, %37 : vector<8x64xf32>
    %42 = arith.addf %39, %41 : vector<8x64xf32>
    %43 = vector.extract_strided_slice %35 {offsets = [0, 128], sizes = [8, 64], strides = [1, 1]} : vector<8x192xf32> to vector<8x64xf32>
    %44 = math.tanh %42 : vector<8x64xf32>
    %45 = arith.mulf %43, %44 : vector<8x64xf32>
    %46 = arith.index_cast %c0_i32 : i32 to index
    %c0_12 = arith.constant 0 : index
    %c0_13 = arith.constant 0 : index
    %47 = vector.load %arg8[%46, %c0_12, %c0_13] : memref<8x8x64xf32, #tpu.memory_space<vmem>>, vector<1x8x64xf32>
    %48 = vector.shape_cast %47 : vector<1x8x64xf32> to vector<8x64xf32>
    %49 = vector.shape_cast %45 : vector<8x64xf32> to vector<1x8x64xf32>
    tpu.vector_store %arg8[%46, %c0_12, %c0_13], %49 {strides = array<i32>} : memref<8x8x64xf32, #tpu.memory_space<vmem>>, vector<1x8x64xf32>,
    %c1_i32 = arith.constant 1 : i32
    %c0_14 = arith.constant 0 : index
    %50 = arith.index_cast %c1_i32 : i32 to index
    %c0_15 = arith.constant 0 : index
    %c0_16 = arith.constant 0 : index
    %51 = vector.load %arg1[%c0_14, %50, %c0_15, %c0_16] : memref<1x8x8x256xf32, #tpu.memory_space<vmem>>, vector<1x1x8x256xf32>
    %52 = vector.shape_cast %51 : vector<1x1x8x256xf32> to vector<8x256xf32>
    %cst_17 = arith.constant dense<0.000000e+00> : vector<8x256xf32>
    %53 = tpu.matmul %26, %0, %cst_17 {dimension_numbers = #tpu.dot_dimension_numbers<[1], [0], [0], [1], [0, 0, 1, 1], [], []>} : vector<8x64xf32>, vector<64x256xf32>, vector<8x256xf32> -> vector<8x256xf32>
    %54 = arith.addf %52, %53 : vector<8x256xf32>
    %55 = vector.extract_strided_slice %54 {offsets = [0, 0], sizes = [8, 192], strides = [1, 1]} : vector<8x256xf32> to vector<8x192xf32>
    %56 = arith.negf %55 : vector<8x192xf32>
    %57 = math.exp %56 : vector<8x192xf32>
    %cst_18 = arith.constant 1.000000e+00 : f32
    %58 = vector.broadcast %cst_18 : f32 to vector<8x192xf32>
    %59 = arith.addf %58, %57 : vector<8x192xf32>
    %60 = arith.divf %58, %59 : vector<8x192xf32>
    %61 = vector.extract_strided_slice %54 {offsets = [0, 192], sizes = [8, 64], strides = [1, 1]} : vector<8x256xf32> to vector<8x64xf32>
    %62 = math.tanh %61 : vector<8x64xf32>
    %63 = vector.extract_strided_slice %60 {offsets = [0, 64], sizes = [8, 64], strides = [1, 1]} : vector<8x192xf32> to vector<8x64xf32>
    %64 = arith.mulf %63, %23 : vector<8x64xf32>
    %65 = vector.extract_strided_slice %60 {offsets = [0, 0], sizes = [8, 64], strides = [1, 1]} : vector<8x192xf32> to vector<8x64xf32>
    %66 = arith.mulf %65, %62 : vector<8x64xf32>
    %67 = arith.addf %64, %66 : vector<8x64xf32>
    %68 = vector.extract_strided_slice %60 {offsets = [0, 128], sizes = [8, 64], strides = [1, 1]} : vector<8x192xf32> to vector<8x64xf32>
    %69 = math.tanh %67 : vector<8x64xf32>
    %70 = arith.mulf %68, %69 : vector<8x64xf32>
    %71 = tpu.concatenate %70, %45 in 1 : vector<8x64xf32>, vector<8x64xf32> -> vector<8x128xf32>
    %cst_19 = arith.constant dense<0.000000e+00> : vector<8x256xf32>
    %72 = tpu.matmul %71, %1, %cst_19 {dimension_numbers = #tpu.dot_dimension_numbers<[1], [0], [0], [1], [0, 0, 1, 1], [], []>} : vector<8x128xf32>, vector<128x256xf32>, vector<8x256xf32> -> vector<8x256xf32>
    %73 = arith.addf %72, %4 : vector<8x256xf32>
    %74 = vector.extract_strided_slice %73 {offsets = [0, 0], sizes = [8, 192], strides = [1, 1]} : vector<8x256xf32> to vector<8x192xf32>
    %75 = arith.negf %74 : vector<8x192xf32>
    %76 = math.exp %75 : vector<8x192xf32>
    %cst_20 = arith.constant 1.000000e+00 : f32
    %77 = vector.broadcast %cst_20 : f32 to vector<8x192xf32>
    %78 = arith.addf %77, %76 : vector<8x192xf32>
    %79 = arith.divf %77, %78 : vector<8x192xf32>
    %80 = vector.extract_strided_slice %73 {offsets = [0, 192], sizes = [8, 64], strides = [1, 1]} : vector<8x256xf32> to vector<8x64xf32>
    %81 = math.tanh %80 : vector<8x64xf32>
    %82 = vector.extract_strided_slice %79 {offsets = [0, 64], sizes = [8, 64], strides = [1, 1]} : vector<8x192xf32> to vector<8x64xf32>
    %83 = arith.mulf %82, %42 : vector<8x64xf32>
    %84 = vector.extract_strided_slice %79 {offsets = [0, 0], sizes = [8, 64], strides = [1, 1]} : vector<8x192xf32> to vector<8x64xf32>
    %85 = arith.mulf %84, %81 : vector<8x64xf32>
    %86 = arith.addf %83, %85 : vector<8x64xf32>
    %87 = vector.extract_strided_slice %79 {offsets = [0, 128], sizes = [8, 64], strides = [1, 1]} : vector<8x192xf32> to vector<8x64xf32>
    %88 = math.tanh %86 : vector<8x64xf32>
    %89 = arith.mulf %87, %88 : vector<8x64xf32>
    %90 = arith.index_cast %c1_i32 : i32 to index
    %c0_21 = arith.constant 0 : index
    %c0_22 = arith.constant 0 : index
    %91 = vector.load %arg8[%90, %c0_21, %c0_22] : memref<8x8x64xf32, #tpu.memory_space<vmem>>, vector<1x8x64xf32>
    %92 = vector.shape_cast %91 : vector<1x8x64xf32> to vector<8x64xf32>
    %93 = vector.shape_cast %89 : vector<8x64xf32> to vector<1x8x64xf32>
    tpu.vector_store %arg8[%90, %c0_21, %c0_22], %93 {strides = array<i32>} : memref<8x8x64xf32, #tpu.memory_space<vmem>>, vector<1x8x64xf32>,
    %c2_i32 = arith.constant 2 : i32
    %c0_23 = arith.constant 0 : index
    %94 = arith.index_cast %c2_i32 : i32 to index
    %c0_24 = arith.constant 0 : index
    %c0_25 = arith.constant 0 : index
    %95 = vector.load %arg1[%c0_23, %94, %c0_24, %c0_25] : memref<1x8x8x256xf32, #tpu.memory_space<vmem>>, vector<1x1x8x256xf32>
    %96 = vector.shape_cast %95 : vector<1x1x8x256xf32> to vector<8x256xf32>
    %cst_26 = arith.constant dense<0.000000e+00> : vector<8x256xf32>
    %97 = tpu.matmul %70, %0, %cst_26 {dimension_numbers = #tpu.dot_dimension_numbers<[1], [0], [0], [1], [0, 0, 1, 1], [], []>} : vector<8x64xf32>, vector<64x256xf32>, vector<8x256xf32> -> vector<8x256xf32>
    %98 = arith.addf %96, %97 : vector<8x256xf32>
    %99 = vector.extract_strided_slice %98 {offsets = [0, 0], sizes = [8, 192], strides = [1, 1]} : vector<8x256xf32> to vector<8x192xf32>
    %100 = arith.negf %99 : vector<8x192xf32>
    %101 = math.exp %100 : vector<8x192xf32>
    %cst_27 = arith.constant 1.000000e+00 : f32
    %102 = vector.broadcast %cst_27 : f32 to vector<8x192xf32>
    %103 = arith.addf %102, %101 : vector<8x192xf32>
    %104 = arith.divf %102, %103 : vector<8x192xf32>
    %105 = vector.extract_strided_slice %98 {offsets = [0, 192], sizes = [8, 64], strides = [1, 1]} : vector<8x256xf32> to vector<8x64xf32>
    %106 = math.tanh %105 : vector<8x64xf32>
    %107 = vector.extract_strided_slice %104 {offsets = [0, 64], sizes = [8, 64], strides = [1, 1]} : vector<8x192xf32> to vector<8x64xf32>
    %108 = arith.mulf %107, %67 : vector<8x64xf32>
    %109 = vector.extract_strided_slice %104 {offsets = [0, 0], sizes = [8, 64], strides = [1, 1]} : vector<8x192xf32> to vector<8x64xf32>
    %110 = arith.mulf %109, %106 : vector<8x64xf32>
    %111 = arith.addf %108, %110 : vector<8x64xf32>
    %112 = vector.extract_strided_slice %104 {offsets = [0, 128], sizes = [8, 64], strides = [1, 1]} : vector<8x192xf32> to vector<8x64xf32>
    %113 = math.tanh %111 : vector<8x64xf32>
    %114 = arith.mulf %112, %113 : vector<8x64xf32>
    %115 = tpu.concatenate %114, %89 in 1 : vector<8x64xf32>, vector<8x64xf32> -> vector<8x128xf32>
    %cst_28 = arith.constant dense<0.000000e+00> : vector<8x256xf32>
    %116 = tpu.matmul %115, %1, %cst_28 {dimension_numbers = #tpu.dot_dimension_numbers<[1], [0], [0], [1], [0, 0, 1, 1], [], []>} : vector<8x128xf32>, vector<128x256xf32>, vector<8x256xf32> -> vector<8x256xf32>
    %117 = arith.addf %116, %4 : vector<8x256xf32>
    %118 = vector.extract_strided_slice %117 {offsets = [0, 0], sizes = [8, 192], strides = [1, 1]} : vector<8x256xf32> to vector<8x192xf32>
    %119 = arith.negf %118 : vector<8x192xf32>
    %120 = math.exp %119 : vector<8x192xf32>
    %cst_29 = arith.constant 1.000000e+00 : f32
    %121 = vector.broadcast %cst_29 : f32 to vector<8x192xf32>
    %122 = arith.addf %121, %120 : vector<8x192xf32>
    %123 = arith.divf %121, %122 : vector<8x192xf32>
    %124 = vector.extract_strided_slice %117 {offsets = [0, 192], sizes = [8, 64], strides = [1, 1]} : vector<8x256xf32> to vector<8x64xf32>
    %125 = math.tanh %124 : vector<8x64xf32>
    %126 = vector.extract_strided_slice %123 {offsets = [0, 64], sizes = [8, 64], strides = [1, 1]} : vector<8x192xf32> to vector<8x64xf32>
    %127 = arith.mulf %126, %86 : vector<8x64xf32>
    %128 = vector.extract_strided_slice %123 {offsets = [0, 0], sizes = [8, 64], strides = [1, 1]} : vector<8x192xf32> to vector<8x64xf32>
    %129 = arith.mulf %128, %125 : vector<8x64xf32>
    %130 = arith.addf %127, %129 : vector<8x64xf32>
    %131 = vector.extract_strided_slice %123 {offsets = [0, 128], sizes = [8, 64], strides = [1, 1]} : vector<8x192xf32> to vector<8x64xf32>
    %132 = math.tanh %130 : vector<8x64xf32>
    %133 = arith.mulf %131, %132 : vector<8x64xf32>
    %134 = arith.index_cast %c2_i32 : i32 to index
    %c0_30 = arith.constant 0 : index
    %c0_31 = arith.constant 0 : index
    %135 = vector.load %arg8[%134, %c0_30, %c0_31] : memref<8x8x64xf32, #tpu.memory_space<vmem>>, vector<1x8x64xf32>
    %136 = vector.shape_cast %135 : vector<1x8x64xf32> to vector<8x64xf32>
    %137 = vector.shape_cast %133 : vector<8x64xf32> to vector<1x8x64xf32>
    tpu.vector_store %arg8[%134, %c0_30, %c0_31], %137 {strides = array<i32>} : memref<8x8x64xf32, #tpu.memory_space<vmem>>, vector<1x8x64xf32>,
    %c3_i32 = arith.constant 3 : i32
    %c0_32 = arith.constant 0 : index
    %138 = arith.index_cast %c3_i32 : i32 to index
    %c0_33 = arith.constant 0 : index
    %c0_34 = arith.constant 0 : index
    %139 = vector.load %arg1[%c0_32, %138, %c0_33, %c0_34] : memref<1x8x8x256xf32, #tpu.memory_space<vmem>>, vector<1x1x8x256xf32>
    %140 = vector.shape_cast %139 : vector<1x1x8x256xf32> to vector<8x256xf32>
    %cst_35 = arith.constant dense<0.000000e+00> : vector<8x256xf32>
    %141 = tpu.matmul %114, %0, %cst_35 {dimension_numbers = #tpu.dot_dimension_numbers<[1], [0], [0], [1], [0, 0, 1, 1], [], []>} : vector<8x64xf32>, vector<64x256xf32>, vector<8x256xf32> -> vector<8x256xf32>
    %142 = arith.addf %140, %141 : vector<8x256xf32>
    %143 = vector.extract_strided_slice %142 {offsets = [0, 0], sizes = [8, 192], strides = [1, 1]} : vector<8x256xf32> to vector<8x192xf32>
    %144 = arith.negf %143 : vector<8x192xf32>
    %145 = math.exp %144 : vector<8x192xf32>
    %cst_36 = arith.constant 1.000000e+00 : f32
    %146 = vector.broadcast %cst_36 : f32 to vector<8x192xf32>
    %147 = arith.addf %146, %145 : vector<8x192xf32>
    %148 = arith.divf %146, %147 : vector<8x192xf32>
    %149 = vector.extract_strided_slice %142 {offsets = [0, 192], sizes = [8, 64], strides = [1, 1]} : vector<8x256xf32> to vector<8x64xf32>
    %150 = math.tanh %149 : vector<8x64xf32>
    %151 = vector.extract_strided_slice %148 {offsets = [0, 64], sizes = [8, 64], strides = [1, 1]} : vector<8x192xf32> to vector<8x64xf32>
    %152 = arith.mulf %151, %111 : vector<8x64xf32>
    %153 = vector.extract_strided_slice %148 {offsets = [0, 0], sizes = [8, 64], strides = [1, 1]} : vector<8x192xf32> to vector<8x64xf32>
    %154 = arith.mulf %153, %150 : vector<8x64xf32>
    %155 = arith.addf %152, %154 : vector<8x64xf32>
    %156 = vector.extract_strided_slice %148 {offsets = [0, 128], sizes = [8, 64], strides = [1, 1]} : vector<8x192xf32> to vector<8x64xf32>
    %157 = math.tanh %155 : vector<8x64xf32>
    %158 = arith.mulf %156, %157 : vector<8x64xf32>
    %159 = tpu.concatenate %158, %133 in 1 : vector<8x64xf32>, vector<8x64xf32> -> vector<8x128xf32>
    %cst_37 = arith.constant dense<0.000000e+00> : vector<8x256xf32>
    %160 = tpu.matmul %159, %1, %cst_37 {dimension_numbers = #tpu.dot_dimension_numbers<[1], [0], [0], [1], [0, 0, 1, 1], [], []>} : vector<8x128xf32>, vector<128x256xf32>, vector<8x256xf32> -> vector<8x256xf32>
    %161 = arith.addf %160, %4 : vector<8x256xf32>
    %162 = vector.extract_strided_slice %161 {offsets = [0, 0], sizes = [8, 192], strides = [1, 1]} : vector<8x256xf32> to vector<8x192xf32>
    %163 = arith.negf %162 : vector<8x192xf32>
    %164 = math.exp %163 : vector<8x192xf32>
    %cst_38 = arith.constant 1.000000e+00 : f32
    %165 = vector.broadcast %cst_38 : f32 to vector<8x192xf32>
    %166 = arith.addf %165, %164 : vector<8x192xf32>
    %167 = arith.divf %165, %166 : vector<8x192xf32>
    %168 = vector.extract_strided_slice %161 {offsets = [0, 192], sizes = [8, 64], strides = [1, 1]} : vector<8x256xf32> to vector<8x64xf32>
    %169 = math.tanh %168 : vector<8x64xf32>
    %170 = vector.extract_strided_slice %167 {offsets = [0, 64], sizes = [8, 64], strides = [1, 1]} : vector<8x192xf32> to vector<8x64xf32>
    %171 = arith.mulf %170, %130 : vector<8x64xf32>
    %172 = vector.extract_strided_slice %167 {offsets = [0, 0], sizes = [8, 64], strides = [1, 1]} : vector<8x192xf32> to vector<8x64xf32>
    %173 = arith.mulf %172, %169 : vector<8x64xf32>
    %174 = arith.addf %171, %173 : vector<8x64xf32>
    %175 = vector.extract_strided_slice %167 {offsets = [0, 128], sizes = [8, 64], strides = [1, 1]} : vector<8x192xf32> to vector<8x64xf32>
    %176 = math.tanh %174 : vector<8x64xf32>
    %177 = arith.mulf %175, %176 : vector<8x64xf32>
    %178 = arith.index_cast %c3_i32 : i32 to index
    %c0_39 = arith.constant 0 : index
    %c0_40 = arith.constant 0 : index
    %179 = vector.load %arg8[%178, %c0_39, %c0_40] : memref<8x8x64xf32, #tpu.memory_space<vmem>>, vector<1x8x64xf32>
    %180 = vector.shape_cast %179 : vector<1x8x64xf32> to vector<8x64xf32>
    %181 = vector.shape_cast %177 : vector<8x64xf32> to vector<1x8x64xf32>
    tpu.vector_store %arg8[%178, %c0_39, %c0_40], %181 {strides = array<i32>} : memref<8x8x64xf32, #tpu.memory_space<vmem>>, vector<1x8x64xf32>,
    %c4_i32 = arith.constant 4 : i32
    %c0_41 = arith.constant 0 : index
    %182 = arith.index_cast %c4_i32 : i32 to index
    %c0_42 = arith.constant 0 : index
    %c0_43 = arith.constant 0 : index
    %183 = vector.load %arg1[%c0_41, %182, %c0_42, %c0_43] : memref<1x8x8x256xf32, #tpu.memory_space<vmem>>, vector<1x1x8x256xf32>
    %184 = vector.shape_cast %183 : vector<1x1x8x256xf32> to vector<8x256xf32>
    %cst_44 = arith.constant dense<0.000000e+00> : vector<8x256xf32>
    %185 = tpu.matmul %158, %0, %cst_44 {dimension_numbers = #tpu.dot_dimension_numbers<[1], [0], [0], [1], [0, 0, 1, 1], [], []>} : vector<8x64xf32>, vector<64x256xf32>, vector<8x256xf32> -> vector<8x256xf32>
    %186 = arith.addf %184, %185 : vector<8x256xf32>
    %187 = vector.extract_strided_slice %186 {offsets = [0, 0], sizes = [8, 192], strides = [1, 1]} : vector<8x256xf32> to vector<8x192xf32>
    %188 = arith.negf %187 : vector<8x192xf32>
    %189 = math.exp %188 : vector<8x192xf32>
    %cst_45 = arith.constant 1.000000e+00 : f32
    %190 = vector.broadcast %cst_45 : f32 to vector<8x192xf32>
    %191 = arith.addf %190, %189 : vector<8x192xf32>
    %192 = arith.divf %190, %191 : vector<8x192xf32>
    %193 = vector.extract_strided_slice %186 {offsets = [0, 192], sizes = [8, 64], strides = [1, 1]} : vector<8x256xf32> to vector<8x64xf32>
    %194 = math.tanh %193 : vector<8x64xf32>
    %195 = vector.extract_strided_slice %192 {offsets = [0, 64], sizes = [8, 64], strides = [1, 1]} : vector<8x192xf32> to vector<8x64xf32>
    %196 = arith.mulf %195, %155 : vector<8x64xf32>
    %197 = vector.extract_strided_slice %192 {offsets = [0, 0], sizes = [8, 64], strides = [1, 1]} : vector<8x192xf32> to vector<8x64xf32>
    %198 = arith.mulf %197, %194 : vector<8x64xf32>
    %199 = arith.addf %196, %198 : vector<8x64xf32>
    %200 = vector.extract_strided_slice %192 {offsets = [0, 128], sizes = [8, 64], strides = [1, 1]} : vector<8x192xf32> to vector<8x64xf32>
    %201 = math.tanh %199 : vector<8x64xf32>
    %202 = arith.mulf %200, %201 : vector<8x64xf32>
    %203 = tpu.concatenate %202, %177 in 1 : vector<8x64xf32>, vector<8x64xf32> -> vector<8x128xf32>
    %cst_46 = arith.constant dense<0.000000e+00> : vector<8x256xf32>
    %204 = tpu.matmul %203, %1, %cst_46 {dimension_numbers = #tpu.dot_dimension_numbers<[1], [0], [0], [1], [0, 0, 1, 1], [], []>} : vector<8x128xf32>, vector<128x256xf32>, vector<8x256xf32> -> vector<8x256xf32>
    %205 = arith.addf %204, %4 : vector<8x256xf32>
    %206 = vector.extract_strided_slice %205 {offsets = [0, 0], sizes = [8, 192], strides = [1, 1]} : vector<8x256xf32> to vector<8x192xf32>
    %207 = arith.negf %206 : vector<8x192xf32>
    %208 = math.exp %207 : vector<8x192xf32>
    %cst_47 = arith.constant 1.000000e+00 : f32
    %209 = vector.broadcast %cst_47 : f32 to vector<8x192xf32>
    %210 = arith.addf %209, %208 : vector<8x192xf32>
    %211 = arith.divf %209, %210 : vector<8x192xf32>
    %212 = vector.extract_strided_slice %205 {offsets = [0, 192], sizes = [8, 64], strides = [1, 1]} : vector<8x256xf32> to vector<8x64xf32>
    %213 = math.tanh %212 : vector<8x64xf32>
    %214 = vector.extract_strided_slice %211 {offsets = [0, 64], sizes = [8, 64], strides = [1, 1]} : vector<8x192xf32> to vector<8x64xf32>
    %215 = arith.mulf %214, %174 : vector<8x64xf32>
    %216 = vector.extract_strided_slice %211 {offsets = [0, 0], sizes = [8, 64], strides = [1, 1]} : vector<8x192xf32> to vector<8x64xf32>
    %217 = arith.mulf %216, %213 : vector<8x64xf32>
    %218 = arith.addf %215, %217 : vector<8x64xf32>
    %219 = vector.extract_strided_slice %211 {offsets = [0, 128], sizes = [8, 64], strides = [1, 1]} : vector<8x192xf32> to vector<8x64xf32>
    %220 = math.tanh %218 : vector<8x64xf32>
    %221 = arith.mulf %219, %220 : vector<8x64xf32>
    %222 = arith.index_cast %c4_i32 : i32 to index
    %c0_48 = arith.constant 0 : index
    %c0_49 = arith.constant 0 : index
    %223 = vector.load %arg8[%222, %c0_48, %c0_49] : memref<8x8x64xf32, #tpu.memory_space<vmem>>, vector<1x8x64xf32>
    %224 = vector.shape_cast %223 : vector<1x8x64xf32> to vector<8x64xf32>
    %225 = vector.shape_cast %221 : vector<8x64xf32> to vector<1x8x64xf32>
    tpu.vector_store %arg8[%222, %c0_48, %c0_49], %225 {strides = array<i32>} : memref<8x8x64xf32, #tpu.memory_space<vmem>>, vector<1x8x64xf32>,
    %c5_i32 = arith.constant 5 : i32
    %c0_50 = arith.constant 0 : index
    %226 = arith.index_cast %c5_i32 : i32 to index
    %c0_51 = arith.constant 0 : index
    %c0_52 = arith.constant 0 : index
    %227 = vector.load %arg1[%c0_50, %226, %c0_51, %c0_52] : memref<1x8x8x256xf32, #tpu.memory_space<vmem>>, vector<1x1x8x256xf32>
    %228 = vector.shape_cast %227 : vector<1x1x8x256xf32> to vector<8x256xf32>
    %cst_53 = arith.constant dense<0.000000e+00> : vector<8x256xf32>
    %229 = tpu.matmul %202, %0, %cst_53 {dimension_numbers = #tpu.dot_dimension_numbers<[1], [0], [0], [1], [0, 0, 1, 1], [], []>} : vector<8x64xf32>, vector<64x256xf32>, vector<8x256xf32> -> vector<8x256xf32>
    %230 = arith.addf %228, %229 : vector<8x256xf32>
    %231 = vector.extract_strided_slice %230 {offsets = [0, 0], sizes = [8, 192], strides = [1, 1]} : vector<8x256xf32> to vector<8x192xf32>
    %232 = arith.negf %231 : vector<8x192xf32>
    %233 = math.exp %232 : vector<8x192xf32>
    %cst_54 = arith.constant 1.000000e+00 : f32
    %234 = vector.broadcast %cst_54 : f32 to vector<8x192xf32>
    %235 = arith.addf %234, %233 : vector<8x192xf32>
    %236 = arith.divf %234, %235 : vector<8x192xf32>
    %237 = vector.extract_strided_slice %230 {offsets = [0, 192], sizes = [8, 64], strides = [1, 1]} : vector<8x256xf32> to vector<8x64xf32>
    %238 = math.tanh %237 : vector<8x64xf32>
    %239 = vector.extract_strided_slice %236 {offsets = [0, 64], sizes = [8, 64], strides = [1, 1]} : vector<8x192xf32> to vector<8x64xf32>
    %240 = arith.mulf %239, %199 : vector<8x64xf32>
    %241 = vector.extract_strided_slice %236 {offsets = [0, 0], sizes = [8, 64], strides = [1, 1]} : vector<8x192xf32> to vector<8x64xf32>
    %242 = arith.mulf %241, %238 : vector<8x64xf32>
    %243 = arith.addf %240, %242 : vector<8x64xf32>
    %244 = vector.extract_strided_slice %236 {offsets = [0, 128], sizes = [8, 64], strides = [1, 1]} : vector<8x192xf32> to vector<8x64xf32>
    %245 = math.tanh %243 : vector<8x64xf32>
    %246 = arith.mulf %244, %245 : vector<8x64xf32>
    %247 = tpu.concatenate %246, %221 in 1 : vector<8x64xf32>, vector<8x64xf32> -> vector<8x128xf32>
    %cst_55 = arith.constant dense<0.000000e+00> : vector<8x256xf32>
    %248 = tpu.matmul %247, %1, %cst_55 {dimension_numbers = #tpu.dot_dimension_numbers<[1], [0], [0], [1], [0, 0, 1, 1], [], []>} : vector<8x128xf32>, vector<128x256xf32>, vector<8x256xf32> -> vector<8x256xf32>
    %249 = arith.addf %248, %4 : vector<8x256xf32>
    %250 = vector.extract_strided_slice %249 {offsets = [0, 0], sizes = [8, 192], strides = [1, 1]} : vector<8x256xf32> to vector<8x192xf32>
    %251 = arith.negf %250 : vector<8x192xf32>
    %252 = math.exp %251 : vector<8x192xf32>
    %cst_56 = arith.constant 1.000000e+00 : f32
    %253 = vector.broadcast %cst_56 : f32 to vector<8x192xf32>
    %254 = arith.addf %253, %252 : vector<8x192xf32>
    %255 = arith.divf %253, %254 : vector<8x192xf32>
    %256 = vector.extract_strided_slice %249 {offsets = [0, 192], sizes = [8, 64], strides = [1, 1]} : vector<8x256xf32> to vector<8x64xf32>
    %257 = math.tanh %256 : vector<8x64xf32>
    %258 = vector.extract_strided_slice %255 {offsets = [0, 64], sizes = [8, 64], strides = [1, 1]} : vector<8x192xf32> to vector<8x64xf32>
    %259 = arith.mulf %258, %218 : vector<8x64xf32>
    %260 = vector.extract_strided_slice %255 {offsets = [0, 0], sizes = [8, 64], strides = [1, 1]} : vector<8x192xf32> to vector<8x64xf32>
    %261 = arith.mulf %260, %257 : vector<8x64xf32>
    %262 = arith.addf %259, %261 : vector<8x64xf32>
    %263 = vector.extract_strided_slice %255 {offsets = [0, 128], sizes = [8, 64], strides = [1, 1]} : vector<8x192xf32> to vector<8x64xf32>
    %264 = math.tanh %262 : vector<8x64xf32>
    %265 = arith.mulf %263, %264 : vector<8x64xf32>
    %266 = arith.index_cast %c5_i32 : i32 to index
    %c0_57 = arith.constant 0 : index
    %c0_58 = arith.constant 0 : index
    %267 = vector.load %arg8[%266, %c0_57, %c0_58] : memref<8x8x64xf32, #tpu.memory_space<vmem>>, vector<1x8x64xf32>
    %268 = vector.shape_cast %267 : vector<1x8x64xf32> to vector<8x64xf32>
    %269 = vector.shape_cast %265 : vector<8x64xf32> to vector<1x8x64xf32>
    tpu.vector_store %arg8[%266, %c0_57, %c0_58], %269 {strides = array<i32>} : memref<8x8x64xf32, #tpu.memory_space<vmem>>, vector<1x8x64xf32>,
    %c6_i32 = arith.constant 6 : i32
    %c0_59 = arith.constant 0 : index
    %270 = arith.index_cast %c6_i32 : i32 to index
    %c0_60 = arith.constant 0 : index
    %c0_61 = arith.constant 0 : index
    %271 = vector.load %arg1[%c0_59, %270, %c0_60, %c0_61] : memref<1x8x8x256xf32, #tpu.memory_space<vmem>>, vector<1x1x8x256xf32>
    %272 = vector.shape_cast %271 : vector<1x1x8x256xf32> to vector<8x256xf32>
    %cst_62 = arith.constant dense<0.000000e+00> : vector<8x256xf32>
    %273 = tpu.matmul %246, %0, %cst_62 {dimension_numbers = #tpu.dot_dimension_numbers<[1], [0], [0], [1], [0, 0, 1, 1], [], []>} : vector<8x64xf32>, vector<64x256xf32>, vector<8x256xf32> -> vector<8x256xf32>
    %274 = arith.addf %272, %273 : vector<8x256xf32>
    %275 = vector.extract_strided_slice %274 {offsets = [0, 0], sizes = [8, 192], strides = [1, 1]} : vector<8x256xf32> to vector<8x192xf32>
    %276 = arith.negf %275 : vector<8x192xf32>
    %277 = math.exp %276 : vector<8x192xf32>
    %cst_63 = arith.constant 1.000000e+00 : f32
    %278 = vector.broadcast %cst_63 : f32 to vector<8x192xf32>
    %279 = arith.addf %278, %277 : vector<8x192xf32>
    %280 = arith.divf %278, %279 : vector<8x192xf32>
    %281 = vector.extract_strided_slice %274 {offsets = [0, 192], sizes = [8, 64], strides = [1, 1]} : vector<8x256xf32> to vector<8x64xf32>
    %282 = math.tanh %281 : vector<8x64xf32>
    %283 = vector.extract_strided_slice %280 {offsets = [0, 64], sizes = [8, 64], strides = [1, 1]} : vector<8x192xf32> to vector<8x64xf32>
    %284 = arith.mulf %283, %243 : vector<8x64xf32>
    %285 = vector.extract_strided_slice %280 {offsets = [0, 0], sizes = [8, 64], strides = [1, 1]} : vector<8x192xf32> to vector<8x64xf32>
    %286 = arith.mulf %285, %282 : vector<8x64xf32>
    %287 = arith.addf %284, %286 : vector<8x64xf32>
    %288 = vector.extract_strided_slice %280 {offsets = [0, 128], sizes = [8, 64], strides = [1, 1]} : vector<8x192xf32> to vector<8x64xf32>
    %289 = math.tanh %287 : vector<8x64xf32>
    %290 = arith.mulf %288, %289 : vector<8x64xf32>
    %291 = tpu.concatenate %290, %265 in 1 : vector<8x64xf32>, vector<8x64xf32> -> vector<8x128xf32>
    %cst_64 = arith.constant dense<0.000000e+00> : vector<8x256xf32>
    %292 = tpu.matmul %291, %1, %cst_64 {dimension_numbers = #tpu.dot_dimension_numbers<[1], [0], [0], [1], [0, 0, 1, 1], [], []>} : vector<8x128xf32>, vector<128x256xf32>, vector<8x256xf32> -> vector<8x256xf32>
    %293 = arith.addf %292, %4 : vector<8x256xf32>
    %294 = vector.extract_strided_slice %293 {offsets = [0, 0], sizes = [8, 192], strides = [1, 1]} : vector<8x256xf32> to vector<8x192xf32>
    %295 = arith.negf %294 : vector<8x192xf32>
    %296 = math.exp %295 : vector<8x192xf32>
    %cst_65 = arith.constant 1.000000e+00 : f32
    %297 = vector.broadcast %cst_65 : f32 to vector<8x192xf32>
    %298 = arith.addf %297, %296 : vector<8x192xf32>
    %299 = arith.divf %297, %298 : vector<8x192xf32>
    %300 = vector.extract_strided_slice %293 {offsets = [0, 192], sizes = [8, 64], strides = [1, 1]} : vector<8x256xf32> to vector<8x64xf32>
    %301 = math.tanh %300 : vector<8x64xf32>
    %302 = vector.extract_strided_slice %299 {offsets = [0, 64], sizes = [8, 64], strides = [1, 1]} : vector<8x192xf32> to vector<8x64xf32>
    %303 = arith.mulf %302, %262 : vector<8x64xf32>
    %304 = vector.extract_strided_slice %299 {offsets = [0, 0], sizes = [8, 64], strides = [1, 1]} : vector<8x192xf32> to vector<8x64xf32>
    %305 = arith.mulf %304, %301 : vector<8x64xf32>
    %306 = arith.addf %303, %305 : vector<8x64xf32>
    %307 = vector.extract_strided_slice %299 {offsets = [0, 128], sizes = [8, 64], strides = [1, 1]} : vector<8x192xf32> to vector<8x64xf32>
    %308 = math.tanh %306 : vector<8x64xf32>
    %309 = arith.mulf %307, %308 : vector<8x64xf32>
    %310 = arith.index_cast %c6_i32 : i32 to index
    %c0_66 = arith.constant 0 : index
    %c0_67 = arith.constant 0 : index
    %311 = vector.load %arg8[%310, %c0_66, %c0_67] : memref<8x8x64xf32, #tpu.memory_space<vmem>>, vector<1x8x64xf32>
    %312 = vector.shape_cast %311 : vector<1x8x64xf32> to vector<8x64xf32>
    %313 = vector.shape_cast %309 : vector<8x64xf32> to vector<1x8x64xf32>
    tpu.vector_store %arg8[%310, %c0_66, %c0_67], %313 {strides = array<i32>} : memref<8x8x64xf32, #tpu.memory_space<vmem>>, vector<1x8x64xf32>,
    %c7_i32 = arith.constant 7 : i32
    %c0_68 = arith.constant 0 : index
    %314 = arith.index_cast %c7_i32 : i32 to index
    %c0_69 = arith.constant 0 : index
    %c0_70 = arith.constant 0 : index
    %315 = vector.load %arg1[%c0_68, %314, %c0_69, %c0_70] : memref<1x8x8x256xf32, #tpu.memory_space<vmem>>, vector<1x1x8x256xf32>
    %316 = vector.shape_cast %315 : vector<1x1x8x256xf32> to vector<8x256xf32>
    %cst_71 = arith.constant dense<0.000000e+00> : vector<8x256xf32>
    %317 = tpu.matmul %290, %0, %cst_71 {dimension_numbers = #tpu.dot_dimension_numbers<[1], [0], [0], [1], [0, 0, 1, 1], [], []>} : vector<8x64xf32>, vector<64x256xf32>, vector<8x256xf32> -> vector<8x256xf32>
    %318 = arith.addf %316, %317 : vector<8x256xf32>
    %319 = vector.extract_strided_slice %318 {offsets = [0, 0], sizes = [8, 192], strides = [1, 1]} : vector<8x256xf32> to vector<8x192xf32>
    %320 = arith.negf %319 : vector<8x192xf32>
    %321 = math.exp %320 : vector<8x192xf32>
    %cst_72 = arith.constant 1.000000e+00 : f32
    %322 = vector.broadcast %cst_72 : f32 to vector<8x192xf32>
    %323 = arith.addf %322, %321 : vector<8x192xf32>
    %324 = arith.divf %322, %323 : vector<8x192xf32>
    %325 = vector.extract_strided_slice %318 {offsets = [0, 192], sizes = [8, 64], strides = [1, 1]} : vector<8x256xf32> to vector<8x64xf32>
    %326 = math.tanh %325 : vector<8x64xf32>
    %327 = vector.extract_strided_slice %324 {offsets = [0, 64], sizes = [8, 64], strides = [1, 1]} : vector<8x192xf32> to vector<8x64xf32>
    %328 = arith.mulf %327, %287 : vector<8x64xf32>
    %329 = vector.extract_strided_slice %324 {offsets = [0, 0], sizes = [8, 64], strides = [1, 1]} : vector<8x192xf32> to vector<8x64xf32>
    %330 = arith.mulf %329, %326 : vector<8x64xf32>
    %331 = arith.addf %328, %330 : vector<8x64xf32>
    %332 = vector.extract_strided_slice %324 {offsets = [0, 128], sizes = [8, 64], strides = [1, 1]} : vector<8x192xf32> to vector<8x64xf32>
    %333 = math.tanh %331 : vector<8x64xf32>
    %334 = arith.mulf %332, %333 : vector<8x64xf32>
    %335 = tpu.concatenate %334, %309 in 1 : vector<8x64xf32>, vector<8x64xf32> -> vector<8x128xf32>
    %cst_73 = arith.constant dense<0.000000e+00> : vector<8x256xf32>
    %336 = tpu.matmul %335, %1, %cst_73 {dimension_numbers = #tpu.dot_dimension_numbers<[1], [0], [0], [1], [0, 0, 1, 1], [], []>} : vector<8x128xf32>, vector<128x256xf32>, vector<8x256xf32> -> vector<8x256xf32>
    %337 = arith.addf %336, %4 : vector<8x256xf32>
    %338 = vector.extract_strided_slice %337 {offsets = [0, 0], sizes = [8, 192], strides = [1, 1]} : vector<8x256xf32> to vector<8x192xf32>
    %339 = arith.negf %338 : vector<8x192xf32>
    %340 = math.exp %339 : vector<8x192xf32>
    %cst_74 = arith.constant 1.000000e+00 : f32
    %341 = vector.broadcast %cst_74 : f32 to vector<8x192xf32>
    %342 = arith.addf %341, %340 : vector<8x192xf32>
    %343 = arith.divf %341, %342 : vector<8x192xf32>
    %344 = vector.extract_strided_slice %337 {offsets = [0, 192], sizes = [8, 64], strides = [1, 1]} : vector<8x256xf32> to vector<8x64xf32>
    %345 = math.tanh %344 : vector<8x64xf32>
    %346 = vector.extract_strided_slice %343 {offsets = [0, 64], sizes = [8, 64], strides = [1, 1]} : vector<8x192xf32> to vector<8x64xf32>
    %347 = arith.mulf %346, %306 : vector<8x64xf32>
    %348 = vector.extract_strided_slice %343 {offsets = [0, 0], sizes = [8, 64], strides = [1, 1]} : vector<8x192xf32> to vector<8x64xf32>
    %349 = arith.mulf %348, %345 : vector<8x64xf32>
    %350 = arith.addf %347, %349 : vector<8x64xf32>
    %351 = vector.extract_strided_slice %343 {offsets = [0, 128], sizes = [8, 64], strides = [1, 1]} : vector<8x192xf32> to vector<8x64xf32>
    %352 = math.tanh %350 : vector<8x64xf32>
    %353 = arith.mulf %351, %352 : vector<8x64xf32>
    %354 = arith.index_cast %c7_i32 : i32 to index
    %c0_75 = arith.constant 0 : index
    %c0_76 = arith.constant 0 : index
    %355 = vector.load %arg8[%354, %c0_75, %c0_76] : memref<8x8x64xf32, #tpu.memory_space<vmem>>, vector<1x8x64xf32>
    %356 = vector.shape_cast %355 : vector<1x8x64xf32> to vector<8x64xf32>
    %357 = vector.shape_cast %353 : vector<8x64xf32> to vector<1x8x64xf32>
    tpu.vector_store %arg8[%354, %c0_75, %c0_76], %357 {strides = array<i32>} : memref<8x8x64xf32, #tpu.memory_space<vmem>>, vector<1x8x64xf32>,
    %c8_i32 = arith.constant 8 : i32
    %c0_77 = arith.constant 0 : index
    %c0_78 = arith.constant 0 : index
    %c0_79 = arith.constant 0 : index
    %358 = vector.load %arg8[%c0_77, %c0_78, %c0_79] : memref<8x8x64xf32, #tpu.memory_space<vmem>>, vector<8x8x64xf32>
    %c0_80 = arith.constant 0 : index
    %c0_81 = arith.constant 0 : index
    %359 = vector.load %arg5[%c0_80, %c0_81] : memref<1x64xf32, #tpu.memory_space<vmem>>, vector<1x64xf32>
    %360 = vector.shape_cast %359 : vector<1x64xf32> to vector<1x1x64xf32>
    %361 = vector.broadcast %360 : vector<1x1x64xf32> to vector<8x8x64xf32>
    %362 = arith.mulf %358, %361 : vector<8x8x64xf32>
    %cst_82 = arith.constant dense<0.000000e+00> : vector<8x8xf32>
    %363 = vector.multi_reduction <add>, %362, %cst_82 [2] : vector<8x8x64xf32> to vector<8x8xf32>
    %c0_83 = arith.constant 0 : index
    %c0_84 = arith.constant 0 : index
    %364 = vector.load %arg6[%c0_83, %c0_84] : memref<1x1xf32, #tpu.memory_space<vmem>>, vector<1x1xf32>
    %365 = vector.broadcast %364 : vector<1x1xf32> to vector<8x8xf32>
    %366 = arith.addf %363, %365 : vector<8x8xf32>
    %c0_85 = arith.constant 0 : index
    %c0_86 = arith.constant 0 : index
    %c0_87 = arith.constant 0 : index
    %367 = vector.load %arg7[%c0_85, %c0_86, %c0_87] : memref<1x8x8xf32, #tpu.memory_space<vmem>>, vector<1x8x8xf32>
    %368 = vector.shape_cast %367 : vector<1x8x8xf32> to vector<8x8xf32>
    %369 = vector.shape_cast %366 : vector<8x8xf32> to vector<1x8x8xf32>
    tpu.vector_store %arg7[%c0_85, %c0_86, %c0_87], %369 {strides = array<i32>} : memref<1x8x8xf32, #tpu.memory_space<vmem>>, vector<1x8x8xf32>,
    return
  }
  func.func @transform_0(%arg0: i32) -> (i32, i32, i32, i32) {
    %c0_i32 = arith.constant 0 : i32
    %c0_i32_0 = arith.constant 0 : i32
    %c0_i32_1 = arith.constant 0 : i32
    %c0_i32_2 = arith.constant 0 : i32
    return %arg0, %c0_i32, %c0_i32_0, %c0_i32_1 : i32, i32, i32, i32
  }
  func.func @transform_1(%arg0: i32) -> (i32, i32) {
    %c0_i32 = arith.constant 0 : i32
    %c0_i32_0 = arith.constant 0 : i32
    %c0_i32_1 = arith.constant 0 : i32
    return %c0_i32, %c0_i32_0 : i32, i32
  }
  func.func @transform_2(%arg0: i32) -> (i32, i32) {
    %c0_i32 = arith.constant 0 : i32
    %c0_i32_0 = arith.constant 0 : i32
    %c0_i32_1 = arith.constant 0 : i32
    return %c0_i32, %c0_i32_0 : i32, i32
  }
  func.func @transform_3(%arg0: i32) -> (i32, i32) {
    %c0_i32 = arith.constant 0 : i32
    %c0_i32_0 = arith.constant 0 : i32
    %c0_i32_1 = arith.constant 0 : i32
    return %c0_i32, %c0_i32_0 : i32, i32
  }
  func.func @transform_4(%arg0: i32) -> (i32, i32) {
    %c0_i32 = arith.constant 0 : i32
    %c0_i32_0 = arith.constant 0 : i32
    %c0_i32_1 = arith.constant 0 : i32
    return %c0_i32, %c0_i32_0 : i32, i32
  }
  func.func @transform_5(%arg0: i32) -> (i32, i32) {
    %c0_i32 = arith.constant 0 : i32
    %c0_i32_0 = arith.constant 0 : i32
    %c0_i32_1 = arith.constant 0 : i32
    return %c0_i32, %c0_i32_0 : i32, i32
  }
  func.func @transform_6(%arg0: i32) -> (i32, i32, i32) {
    %c0_i32 = arith.constant 0 : i32
    %c0_i32_0 = arith.constant 0 : i32
    %c0_i32_1 = arith.constant 0 : i32
    return %arg0, %c0_i32, %c0_i32_0 : i32, i32, i32
  }
}

</mosaic_0001>

<llo_original>
// kernel: tpu_custom_call.1
$region0: #{tpu_custom_call.1}
  #allocation0 [shape = 'u32[]', space=smem, size = 0x4, offset = 0x4, fixed_abs, tag = 'smem constant byte address 0x4 - core index']
  #allocation1 [shape = 'u32[72,128]{1,0:T(1,128)}', space=vmem, size = 0x9000, scoped, tag = 'internal scratch']
  #allocation2 [shape = 'f32[8,8,64]{2,1,0:T(8,128)}', space=vmem, size = 0x8000, scoped, tag = 'scratch operand']
  #allocation3 [shape = 'f32[1,1]{1,0:T(1,128)S(1)}', space=vmem, size = 0x200, scoped, tag = 'scoped memory for tpu_custom_call.1']
  %s0 = inlined_call_operand.hbm [shape: f32[1,8,8,256], index: 0, kind: input, shape index: {}]
  %s1 = inlined_call_operand.hbm [shape: f32[64,256], index: 1, kind: input, shape index: {}]
  %s2 = inlined_call_operand.hbm [shape: f32[128,256], index: 2, kind: input, shape index: {}]
  %s3 = inlined_call_operand.vmem [shape: f32[1,256], index: 3, kind: input, shape index: {}]
  %s4 = inlined_call_operand.vmem [shape: f32[1,64], index: 4, kind: input, shape index: {}]
  %s5 = inlined_call_operand.<no memory space> [shape: f32[1,1], index: 5, kind: input, shape index: {}]
  %s6 = inlined_call_operand.hbm [shape: f32[1,8,8], index: 6, kind: output, shape index: {}]
  %s7 = sld [smem:[#allocation0]]
  $region46: #{tpu_custom_call.1} parent=0
    _
  %s9 = ssub.s32 1, %s7
  %s10 = scalar_select 0, %s9, %s7
  %v11 = vstv %s5
  %12 = vst [vmem:[#allocation3] sm:$0x1] %v11
  $region1: #{tpu_custom_call.1} parent=0
    #allocation4 [shape = 'u8[65536]{0}', space=vmem, size = 0x10000, scoped, tag = 'input window, operand 0, single buffered']
    #allocation5 [shape = 's32[1]{0}', space=sflag, size = 0x4, scoped, tag = 'scoped memory for tpu_custom_call.1']
    #allocation6 [shape = 's32[1]{0}', space=sflag, size = 0x4, scoped, tag = 'scoped memory for tpu_custom_call.1']
    #allocation7 [shape = 'u8[65536]{0}', space=vmem, size = 0x10000, scoped, tag = 'input window, operand 1, single buffered']
    #allocation8 [shape = 's32[1]{0}', space=sflag, size = 0x4, scoped, tag = 'scoped memory for tpu_custom_call.1']
    #allocation9 [shape = 'u8[131072]{0}', space=vmem, size = 0x20000, scoped, tag = 'input window, operand 2, single buffered']
    #allocation10 [shape = 'u8[4096]{0}', space=vmem, size = 0x1000, scoped, tag = 'output window, operand 0, single buffered']
    %13 = vsyncpa [#allocation5], 0
    %14 = vsyncpa [#allocation8], 0
    %15 = vsyncpa [#allocation6], 0
    // Predicated region
    $region2: #{tpu_custom_call.1} parent=1 // pred_check
      _
    $region3: #{tpu_custom_call.1} parent=1 // pred_check_branch
      %17 = sbr.rel (0) target = $region5
    $region4: #{tpu_custom_call.1} parent=1 // pred_region
      %19 = vsyncadd [#allocation5], 0
      %s20 = sshll.u32 %s0, 4
      %s21 = int_to_ptr.hbm [resolvable:$true] %s20
      %s22 = sshll.u32 [#allocation4], 4
      %s23 = int_to_ptr.vmem [resolvable:$true] %s22
      %28 = dma.hbm_to_vmem [thread:$0]  %s21, 2048, %s23, [#allocation5], 256, 256, 16
    $region5: #{tpu_custom_call.1} parent=1 // pred_fallthru
      _
    // Predicated region
    $region6: #{tpu_custom_call.1} parent=1 // pred_check
      _
    $region7: #{tpu_custom_call.1} parent=1 // pred_check_branch
      %30 = sbr.rel (0) target = $region9
    $region8: #{tpu_custom_call.1} parent=1 // pred_region
      %32 = vsyncadd [#allocation8], 0
      %s33 = sshll.u32 %s1, 4
      %s34 = int_to_ptr.hbm [resolvable:$true] %s33
      %s35 = sshll.u32 [#allocation7], 4
      %s36 = int_to_ptr.vmem [resolvable:$true] %s35
      %41 = dma.hbm_to_vmem [thread:$0]  %s34, 2048, %s36, [#allocation8], 256, 256, 16
    $region9: #{tpu_custom_call.1} parent=1 // pred_fallthru
      _
    // Predicated region
    $region10: #{tpu_custom_call.1} parent=1 // pred_check
      _
    $region11: #{tpu_custom_call.1} parent=1 // pred_check_branch
      %43 = sbr.rel (0) target = $region13
    $region12: #{tpu_custom_call.1} parent=1 // pred_region
      %45 = vsyncadd [#allocation8], 0
      %s46 = sshll.u32 %s2, 4
      %s47 = int_to_ptr.hbm [resolvable:$true] %s46
      %s48 = sshll.u32 [#allocation9], 4
      %s49 = int_to_ptr.vmem [resolvable:$true] %s48
      %54 = dma.hbm_to_vmem [thread:$0]  %s47, 4096, %s49, [#allocation8], 256, 256, 16
    $region13: #{tpu_custom_call.1} parent=1 // pred_fallthru
      _
    // Predicated region
    $region14: #{tpu_custom_call.1} parent=1 // pred_check
      _
    $region15: #{tpu_custom_call.1} parent=1 // pred_check_branch
      %56 = sbr.rel (0) target = $region17
    $region16: #{tpu_custom_call.1} parent=1 // pred_region
      _
    $region17: #{tpu_custom_call.1} parent=1 // pred_fallthru
      _
    // Predicated region
    $region18: #{tpu_custom_call.1} parent=1 // pred_check
      _
    $region19: #{tpu_custom_call.1} parent=1 // pred_check_branch
      %58 = sbr.rel (0) target = $region21
    $region20: #{tpu_custom_call.1} parent=1 // pred_region
      _
    $region21: #{tpu_custom_call.1} parent=1 // pred_fallthru
      _
    // Predicated region
    $region22: #{tpu_custom_call.1} parent=1 // pred_check
      _
    $region23: #{tpu_custom_call.1} parent=1 // pred_check_branch
      %60 = sbr.rel (0) target = $region25
    $region24: #{tpu_custom_call.1} parent=1 // pred_region
      _
    $region25: #{tpu_custom_call.1} parent=1 // pred_fallthru
      _
    // Predicated region
    $region26: #{tpu_custom_call.1} parent=1 // pred_check
      _
    $region27: #{tpu_custom_call.1} parent=1 // pred_check_branch
      %62 = sbr.rel (0) target = $region29
    $region28: #{tpu_custom_call.1} parent=1 // pred_region
      %64 = dma.done [#allocation5], 2048
    $region29: #{tpu_custom_call.1} parent=1 // pred_fallthru
      _
    // Predicated region
    $region30: #{tpu_custom_call.1} parent=1 // pred_check
      _
    $region31: #{tpu_custom_call.1} parent=1 // pred_check_branch
      %66 = sbr.rel (0) target = $region33
    $region32: #{tpu_custom_call.1} parent=1 // pred_region
      %68 = dma.done [#allocation8], 2048
    $region33: #{tpu_custom_call.1} parent=1 // pred_fallthru
      _
    // Predicated region
    $region34: #{tpu_custom_call.1} parent=1 // pred_check
      _
    $region35: #{tpu_custom_call.1} parent=1 // pred_check_branch
      %70 = sbr.rel (0) target = $region37
    $region36: #{tpu_custom_call.1} parent=1 // pred_region
      %72 = dma.done [#allocation8], 4096
    $region37: #{tpu_custom_call.1} parent=1 // pred_fallthru
      _
    %v73 = vld [vmem:[#allocation7] sm:$0xff]
    %v74 = vld [vmem:[#allocation7 + $0x8] sm:$0xff]
    %v75 = vld [vmem:[#allocation7 + $0x10] sm:$0xff]
    %v76 = vld [vmem:[#allocation7 + $0x18] sm:$0xff]
    %v77 = vld [vmem:[#allocation7 + $0x20] sm:$0xff]
    %v78 = vld [vmem:[#allocation7 + $0x28] sm:$0xff]
    %v79 = vld [vmem:[#allocation7 + $0x30] sm:$0xff]
    %v80 = vld [vmem:[#allocation7 + $0x38] sm:$0xff]
    %v81 = vld [vmem:[#allocation7 + $0x40] sm:$0xff]
    %v82 = vld [vmem:[#allocation7 + $0x48] sm:$0xff]
    %v83 = vld [vmem:[#allocation7 + $0x50] sm:$0xff]
    %v84 = vld [vmem:[#allocation7 + $0x58] sm:$0xff]
    %v85 = vld [vmem:[#allocation7 + $0x60] sm:$0xff]
    %v86 = vld [vmem:[#allocation7 + $0x68] sm:$0xff]
    %v87 = vld [vmem:[#allocation7 + $0x70] sm:$0xff]
    %v88 = vld [vmem:[#allocation7 + $0x78] sm:$0xff]
    %v89 = vld [vmem:[#allocation9] sm:$0xff]
    %v90 = vld [vmem:[#allocation9 + $0x8] sm:$0xff]
    %v91 = vld [vmem:[#allocation9 + $0x10] sm:$0xff]
    %v92 = vld [vmem:[#allocation9 + $0x18] sm:$0xff]
    %v93 = vld [vmem:[#allocation9 + $0x20] sm:$0xff]
    %v94 = vld [vmem:[#allocation9 + $0x28] sm:$0xff]
    %v95 = vld [vmem:[#allocation9 + $0x30] sm:$0xff]
    %v96 = vld [vmem:[#allocation9 + $0x38] sm:$0xff]
    %v97 = vld [vmem:[#allocation9 + $0x40] sm:$0xff]
    %v98 = vld [vmem:[#allocation9 + $0x48] sm:$0xff]
    %v99 = vld [vmem:[#allocation9 + $0x50] sm:$0xff]
    %v100 = vld [vmem:[#allocation9 + $0x58] sm:$0xff]
    %v101 = vld [vmem:[#allocation9 + $0x60] sm:$0xff]
    %v102 = vld [vmem:[#allocation9 + $0x68] sm:$0xff]
    %v103 = vld [vmem:[#allocation9 + $0x70] sm:$0xff]
    %v104 = vld [vmem:[#allocation9 + $0x78] sm:$0xff]
    %v105 = vld [vmem:[#allocation9 + $0x80] sm:$0xff]
    %v106 = vld [vmem:[#allocation9 + $0x88] sm:$0xff]
    %v107 = vld [vmem:[#allocation9 + $0x90] sm:$0xff]
    %v108 = vld [vmem:[#allocation9 + $0x98] sm:$0xff]
    %v109 = vld [vmem:[#allocation9 + $0xa0] sm:$0xff]
    %v110 = vld [vmem:[#allocation9 + $0xa8] sm:$0xff]
    %v111 = vld [vmem:[#allocation9 + $0xb0] sm:$0xff]
    %v112 = vld [vmem:[#allocation9 + $0xb8] sm:$0xff]
    %v113 = vld [vmem:[#allocation9 + $0xc0] sm:$0xff]
    %v114 = vld [vmem:[#allocation9 + $0xc8] sm:$0xff]
    %v115 = vld [vmem:[#allocation9 + $0xd0] sm:$0xff]
    %v116 = vld [vmem:[#allocation9 + $0xd8] sm:$0xff]
    %v117 = vld [vmem:[#allocation9 + $0xe0] sm:$0xff]
    %v118 = vld [vmem:[#allocation9 + $0xe8] sm:$0xff]
    %v119 = vld [vmem:[#allocation9 + $0xf0] sm:$0xff]
    %v120 = vld [vmem:[#allocation9 + $0xf8] sm:$0xff]
    %v121 = vld [vmem:[%s3] sm:$0x3]
    %v123 = vperm.slane %v121, 0
    %v124 = vperm.slane %v121, 1
    %v127 = vld [vmem:[#allocation4] sm:$0xff]
    %v128 = vld [vmem:[#allocation4 + $0x8] sm:$0xff]
    %vm129 = vcmask 523264
    %v131 = vsel %vm129, 0.0, 0
    %133 = vmatpush.msra.mxu0 0.0
    %134 = vmatpush.msra.mxu0 0.0
    %135 = vmatpush.msra.mxu0 0.0
    %136 = vmatpush.msra.mxu0 0.0
    %137 = vmatpush.msra.mxu0 0.0
    %138 = vmatpush.msra.mxu0 0.0
    %139 = vmatpush.msra.mxu0 0.0
    %140 = vmatpush.msra.mxu0 0.0
    %141 = vmatpush.msra.mxu0 %v87
    %142 = vmatpush.msra.mxu0 %v85
    %143 = vmatpush.msra.mxu0 %v83
    %144 = vmatpush.msra.mxu0 %v81
    %145 = vmatpush.msra.mxu0 %v79
    %146 = vmatpush.msra.mxu0 %v77
    %147 = vmatpush.msra.mxu0 %v75
    %148 = vmatpush.msra.mxu0 %v73
    %149 = vmatmul.f32.gmra.mxu0 %v131
    %v150 = vpop.f32.mrf.mxu0
    %v151 = vadd.f32 0.0, %v150
    %152 = vdwg.mxu0
    %153 = vmatpush.msra.mxu0 0.0
    %154 = vmatpush.msra.mxu0 0.0
    %155 = vmatpush.msra.mxu0 0.0
    %156 = vmatpush.msra.mxu0 0.0
    %157 = vmatpush.msra.mxu0 0.0
    %158 = vmatpush.msra.mxu0 0.0
    %159 = vmatpush.msra.mxu0 0.0
    %160 = vmatpush.msra.mxu0 0.0
    %161 = vmatpush.msra.mxu0 %v88
    %162 = vmatpush.msra.mxu0 %v86
    %163 = vmatpush.msra.mxu0 %v84
    %164 = vmatpush.msra.mxu0 %v82
    %165 = vmatpush.msra.mxu0 %v80
    %166 = vmatpush.msra.mxu0 %v78
    %167 = vmatpush.msra.mxu0 %v76
    %168 = vmatpush.msra.mxu0 %v74
    %169 = vmatmul.f32.gmra.mxu0 %v131
    %v170 = vpop.f32.mrf.mxu0
    %v171 = vadd.f32 0.0, %v170
    %172 = vdwg.mxu0
    %v173 = vadd.f32 %v127, %v151
    %v174 = vadd.f32 %v128, %v171
    %v175 = vxor.u32 %v173, 2147483648
    %v176 = vxor.u32 %v174, 2147483648
    %v177 = vmul.f32 %v175, 1.442695
    %v178 = vpow.pop %v177
    %v179 = vmul.f32 %v176, 1.442695
    %v180 = vpow.pop %v179
    %v181 = vadd.f32 %v178, 1.0
    %v182 = vadd.f32 %v180, 1.0
    %v183 = vrcp.pop %v181
    %v184 = vmul.f32 %v181, %v183
    %v185 = vsub.f32 1.0, %v184
    %v186 = vmul.f32 %v183, %v185
    %v187 = vadd.f32 %v183, %v186
    %vm188 = vweird.f32 %v181
    %vm189 = vweird.f32 %v183
    %vm190 = vmor %vm188, %vm189
    %v191 = vsel %vm190, %v183, %v187
    %v192 = vand.u32 2147483647, %v181
    %vm193 = vcmp.eq.f32.partialorder %v192, 8.507059e+37
    %v194 = vand.u32 %v181, 2147483648
    %v195 = vor.u32 1.1754944e-38, %v194
    %v196 = vsel %vm193, %v195, %v191
    %v197 = vmul.f32 1.0, %v196
    %v198 = vrcp.pop %v182
    %v199 = vmul.f32 %v182, %v198
    %v200 = vsub.f32 1.0, %v199
    %v201 = vmul.f32 %v198, %v200
    %v202 = vadd.f32 %v198, %v201
    %vm203 = vweird.f32 %v182
    %vm204 = vweird.f32 %v198
    %vm205 = vmor %vm203, %vm204
    %v206 = vsel %vm205, %v198, %v202
    %v207 = vand.u32 2147483647, %v182
    %vm208 = vcmp.eq.f32.partialorder %v207, 8.507059e+37
    %v209 = vand.u32 %v182, 2147483648
    %v210 = vor.u32 1.1754944e-38, %v209
    %v211 = vsel %vm208, %v210, %v206
    %v212 = vmul.f32 1.0, %v211
    %v213 = vtanh.pop %v174
    %v214 = vmul.f32 %v197, 0.0
    %216 = vrot.lane.b32.xlu0 %v213, 64
    %v217 = vpop.permute.xlu0 %216
    %v219 = vmul.f32 %v197, %v217
    %221 = vrot.lane.b32.xlu0 %v219, 64
    %v222 = vpop.permute.xlu0 %221
    %v224 = vadd.f32 %v214, %v222
    %v225 = vtanh.pop %v224
    %227 = vrot.lane.b32.xlu0 %v225, 64
    %v228 = vpop.permute.xlu0 %227
    %v230 = vmul.f32 %v212, %v228
    %v231 = vsel %vm129, %v230, 0.0
    %232 = vmatpush.msra.mxu0 %v119
    %233 = vmatpush.msra.mxu0 %v117
    %234 = vmatpush.msra.mxu0 %v115
    %235 = vmatpush.msra.mxu0 %v113
    %236 = vmatpush.msra.mxu0 %v111
    %237 = vmatpush.msra.mxu0 %v109
    %238 = vmatpush.msra.mxu0 %v107
    %239 = vmatpush.msra.mxu0 %v105
    %240 = vmatpush.msra.mxu0 %v103
    %241 = vmatpush.msra.mxu0 %v101
    %242 = vmatpush.msra.mxu0 %v99
    %243 = vmatpush.msra.mxu0 %v97
    %244 = vmatpush.msra.mxu0 %v95
    %245 = vmatpush.msra.mxu0 %v93
    %246 = vmatpush.msra.mxu0 %v91
    %247 = vmatpush.msra.mxu0 %v89
    %248 = vmatmul.f32.gmra.mxu0 %v231
    %v249 = vpop.f32.mrf.mxu0
    %v250 = vadd.f32 %v123, %v249
    %251 = vdwg.mxu0
    %252 = vmatpush.msra.mxu0 %v120
    %253 = vmatpush.msra.mxu0 %v118
    %254 = vmatpush.msra.mxu0 %v116
    %255 = vmatpush.msra.mxu0 %v114
    %256 = vmatpush.msra.mxu0 %v112
    %257 = vmatpush.msra.mxu0 %v110
    %258 = vmatpush.msra.mxu0 %v108
    %259 = vmatpush.msra.mxu0 %v106
    %260 = vmatpush.msra.mxu0 %v104
    %261 = vmatpush.msra.mxu0 %v102
    %262 = vmatpush.msra.mxu0 %v100
    %263 = vmatpush.msra.mxu0 %v98
    %264 = vmatpush.msra.mxu0 %v96
    %265 = vmatpush.msra.mxu0 %v94
    %266 = vmatpush.msra.mxu0 %v92
    %267 = vmatpush.msra.mxu0 %v90
    %268 = vmatmul.f32.gmra.mxu0 %v231
    %v269 = vpop.f32.mrf.mxu0
    %v270 = vadd.f32 %v124, %v269
    %271 = vdwg.mxu0
    %v272 = vxor.u32 %v250, 2147483648
    %v273 = vxor.u32 %v270, 2147483648
    %v274 = vmul.f32 %v272, 1.442695
    %v275 = vpow.pop %v274
    %v276 = vmul.f32 %v273, 1.442695
    %v277 = vpow.pop %v276
    %v278 = vadd.f32 %v275, 1.0
    %v279 = vadd.f32 %v277, 1.0
    %v280 = vrcp.pop %v278
    %v281 = vmul.f32 %v278, %v280
    %v282 = vsub.f32 1.0, %v281
    %v283 = vmul.f32 %v280, %v282
    %v284 = vadd.f32 %v280, %v283
    %vm285 = vweird.f32 %v278
    %vm286 = vweird.f32 %v280
    %vm287 = vmor %vm285, %vm286
    %v288 = vsel %vm287, %v280, %v284
    %v289 = vand.u32 2147483647, %v278
    %vm290 = vcmp.eq.f32.partialorder %v289, 8.507059e+37
    %v291 = vand.u32 %v278, 2147483648
    %v292 = vor.u32 1.1754944e-38, %v291
    %v293 = vsel %vm290, %v292, %v288
    %v294 = vmul.f32 1.0, %v293
    %v295 = vrcp.pop %v279
    %v296 = vmul.f32 %v279, %v295
    %v297 = vsub.f32 1.0, %v296
    %v298 = vmul.f32 %v295, %v297
    %v299 = vadd.f32 %v295, %v298
    %vm300 = vweird.f32 %v279
    %vm301 = vweird.f32 %v295
    %vm302 = vmor %vm300, %vm301
    %v303 = vsel %vm302, %v295, %v299
    %v304 = vand.u32 2147483647, %v279
    %vm305 = vcmp.eq.f32.partialorder %v304, 8.507059e+37
    %v306 = vand.u32 %v279, 2147483648
    %v307 = vor.u32 1.1754944e-38, %v306
    %v308 = vsel %vm305, %v307, %v303
    %v309 = vmul.f32 1.0, %v308
    %v310 = vtanh.pop %v270
    %v311 = vmul.f32 %v294, 0.0
    %313 = vrot.lane.b32.xlu0 %v310, 64
    %v314 = vpop.permute.xlu0 %313
    %v316 = vmul.f32 %v294, %v314
    %318 = vrot.lane.b32.xlu0 %v316, 64
    %v319 = vpop.permute.xlu0 %318
    %v321 = vadd.f32 %v311, %v319
    %v322 = vtanh.pop %v321
    %324 = vrot.lane.b32.xlu0 %v322, 64
    %v325 = vpop.permute.xlu0 %324
    %v327 = vmul.f32 %v309, %v325
    %328 = vst.msk [vmem:[#allocation2] sm:$0xff] %vm129, %v327
    %s329 = scalar_lea.vmem [#allocation4], 16
    %v330 = vld [vmem:[%s329] sm:$0xff]
    %v331 = vld [vmem:[%s329 + $0x8] sm:$0xff]
    %v333 = vsel %vm129, %v230, 0
    %335 = vmatpush.msra.mxu0 0.0
    %336 = vmatpush.msra.mxu0 0.0
    %337 = vmatpush.msra.mxu0 0.0
    %338 = vmatpush.msra.mxu0 0.0
    %339 = vmatpush.msra.mxu0 0.0
    %340 = vmatpush.msra.mxu0 0.0
    %341 = vmatpush.msra.mxu0 0.0
    %342 = vmatpush.msra.mxu0 0.0
    %343 = vmatpush.msra.mxu0 %v87
    %344 = vmatpush.msra.mxu0 %v85
    %345 = vmatpush.msra.mxu0 %v83
    %346 = vmatpush.msra.mxu0 %v81
    %347 = vmatpush.msra.mxu0 %v79
    %348 = vmatpush.msra.mxu0 %v77
    %349 = vmatpush.msra.mxu0 %v75
    %350 = vmatpush.msra.mxu0 %v73
    %351 = vmatmul.f32.gmra.mxu0 %v333
    %v352 = vpop.f32.mrf.mxu0
    %v353 = vadd.f32 0.0, %v352
    %354 = vdwg.mxu0
    %355 = vmatpush.msra.mxu0 0.0
    %356 = vmatpush.msra.mxu0 0.0
    %357 = vmatpush.msra.mxu0 0.0
    %358 = vmatpush.msra.mxu0 0.0
    %359 = vmatpush.msra.mxu0 0.0
    %360 = vmatpush.msra.mxu0 0.0
    %361 = vmatpush.msra.mxu0 0.0
    %362 = vmatpush.msra.mxu0 0.0
    %363 = vmatpush.msra.mxu0 %v88
    %364 = vmatpush.msra.mxu0 %v86
    %365 = vmatpush.msra.mxu0 %v84
    %366 = vmatpush.msra.mxu0 %v82
    %367 = vmatpush.msra.mxu0 %v80
    %368 = vmatpush.msra.mxu0 %v78
    %369 = vmatpush.msra.mxu0 %v76
    %370 = vmatpush.msra.mxu0 %v74
    %371 = vmatmul.f32.gmra.mxu0 %v333
    %v372 = vpop.f32.mrf.mxu0
    %v373 = vadd.f32 0.0, %v372
    %374 = vdwg.mxu0
    %v375 = vadd.f32 %v330, %v353
    %v376 = vadd.f32 %v331, %v373
    %v377 = vxor.u32 %v375, 2147483648
    %v378 = vxor.u32 %v376, 2147483648
    %v379 = vmul.f32 %v377, 1.442695
    %v380 = vpow.pop %v379
    %v381 = vmul.f32 %v378, 1.442695
    %v382 = vpow.pop %v381
    %v383 = vadd.f32 %v380, 1.0
    %v384 = vadd.f32 %v382, 1.0
    %v385 = vrcp.pop %v383
    %v386 = vmul.f32 %v383, %v385
    %v387 = vsub.f32 1.0, %v386
    %v388 = vmul.f32 %v385, %v387
    %v389 = vadd.f32 %v385, %v388
    %vm390 = vweird.f32 %v383
    %vm391 = vweird.f32 %v385
    %vm392 = vmor %vm390, %vm391
    %v393 = vsel %vm392, %v385, %v389
    %v394 = vand.u32 2147483647, %v383
    %vm395 = vcmp.eq.f32.partialorder %v394, 8.507059e+37
    %v396 = vand.u32 %v383, 2147483648
    %v397 = vor.u32 1.1754944e-38, %v396
    %v398 = vsel %vm395, %v397, %v393
    %v399 = vmul.f32 1.0, %v398
    %v400 = vrcp.pop %v384
    %v401 = vmul.f32 %v384, %v400
    %v402 = vsub.f32 1.0, %v401
    %v403 = vmul.f32 %v400, %v402
    %v404 = vadd.f32 %v400, %v403
    %vm405 = vweird.f32 %v384
    %vm406 = vweird.f32 %v400
    %vm407 = vmor %vm405, %vm406
    %v408 = vsel %vm407, %v400, %v404
    %v409 = vand.u32 2147483647, %v384
    %vm410 = vcmp.eq.f32.partialorder %v409, 8.507059e+37
    %v411 = vand.u32 %v384, 2147483648
    %v412 = vor.u32 1.1754944e-38, %v411
    %v413 = vsel %vm410, %v412, %v408
    %v414 = vmul.f32 1.0, %v413
    %v415 = vtanh.pop %v376
    %v416 = vmul.f32 %v399, %v224
    %418 = vrot.lane.b32.xlu0 %v415, 64
    %v419 = vpop.permute.xlu0 %418
    %v421 = vmul.f32 %v399, %v419
    %423 = vrot.lane.b32.xlu0 %v421, 64
    %v424 = vpop.permute.xlu0 %423
    %v426 = vadd.f32 %v416, %v424
    %v427 = vtanh.pop %v426
    %429 = vrot.lane.b32.xlu0 %v427, 64
    %v430 = vpop.permute.xlu0 %429
    %v432 = vmul.f32 %v414, %v430
    %434 = vrot.lane.b32.xlu0 %v327, 64
    %v435 = vpop.permute.xlu0 %434
    %v437 = vsel %vm129, %v432, %v435
    %438 = vmatpush.msra.mxu0 %v119
    %439 = vmatpush.msra.mxu0 %v117
    %440 = vmatpush.msra.mxu0 %v115
    %441 = vmatpush.msra.mxu0 %v113
    %442 = vmatpush.msra.mxu0 %v111
    %443 = vmatpush.msra.mxu0 %v109
    %444 = vmatpush.msra.mxu0 %v107
    %445 = vmatpush.msra.mxu0 %v105
    %446 = vmatpush.msra.mxu0 %v103
    %447 = vmatpush.msra.mxu0 %v101
    %448 = vmatpush.msra.mxu0 %v99
    %449 = vmatpush.msra.mxu0 %v97
    %450 = vmatpush.msra.mxu0 %v95
    %451 = vmatpush.msra.mxu0 %v93
    %452 = vmatpush.msra.mxu0 %v91
    %453 = vmatpush.msra.mxu0 %v89
    %454 = vmatmul.f32.gmra.mxu0 %v437
    %v455 = vpop.f32.mrf.mxu0
    %v456 = vadd.f32 %v123, %v455
    %457 = vdwg.mxu0
    %458 = vmatpush.msra.mxu0 %v120
    %459 = vmatpush.msra.mxu0 %v118
    %460 = vmatpush.msra.mxu0 %v116
    %461 = vmatpush.msra.mxu0 %v114
    %462 = vmatpush.msra.mxu0 %v112
    %463 = vmatpush.msra.mxu0 %v110
    %464 = vmatpush.msra.mxu0 %v108
    %465 = vmatpush.msra.mxu0 %v106
    %466 = vmatpush.msra.mxu0 %v104
    %467 = vmatpush.msra.mxu0 %v102
    %468 = vmatpush.msra.mxu0 %v100
    %469 = vmatpush.msra.mxu0 %v98
    %470 = vmatpush.msra.mxu0 %v96
    %471 = vmatpush.msra.mxu0 %v94
    %472 = vmatpush.msra.mxu0 %v92
    %473 = vmatpush.msra.mxu0 %v90
    %474 = vmatmul.f32.gmra.mxu0 %v437
    %v475 = vpop.f32.mrf.mxu0
    %v476 = vadd.f32 %v124, %v475
    %477 = vdwg.mxu0
    %v478 = vxor.u32 %v456, 2147483648
    %v479 = vxor.u32 %v476, 2147483648
    %v480 = vmul.f32 %v478, 1.442695
    %v481 = vpow.pop %v480
    %v482 = vmul.f32 %v479, 1.442695
    %v483 = vpow.pop %v482
    %v484 = vadd.f32 %v481, 1.0
    %v485 = vadd.f32 %v483, 1.0
    %v486 = vrcp.pop %v484
    %v487 = vmul.f32 %v484, %v486
    %v488 = vsub.f32 1.0, %v487
    %v489 = vmul.f32 %v486, %v488
    %v490 = vadd.f32 %v486, %v489
    %vm491 = vweird.f32 %v484
    %vm492 = vweird.f32 %v486
    %vm493 = vmor %vm491, %vm492
    %v494 = vsel %vm493, %v486, %v490
    %v495 = vand.u32 2147483647, %v484
    %vm496 = vcmp.eq.f32.partialorder %v495, 8.507059e+37
    %v497 = vand.u32 %v484, 2147483648
    %v498 = vor.u32 1.1754944e-38, %v497
    %v499 = vsel %vm496, %v498, %v494
    %v500 = vmul.f32 1.0, %v499
    %v501 = vrcp.pop %v485
    %v502 = vmul.f32 %v485, %v501
    %v503 = vsub.f32 1.0, %v502
    %v504 = vmul.f32 %v501, %v503
    %v505 = vadd.f32 %v501, %v504
    %vm506 = vweird.f32 %v485
    %vm507 = vweird.f32 %v501
    %vm508 = vmor %vm506, %vm507
    %v509 = vsel %vm508, %v501, %v505
    %v510 = vand.u32 2147483647, %v485
    %vm511 = vcmp.eq.f32.partialorder %v510, 8.507059e+37
    %v512 = vand.u32 %v485, 2147483648
    %v513 = vor.u32 1.1754944e-38, %v512
    %v514 = vsel %vm511, %v513, %v509
    %v515 = vmul.f32 1.0, %v514
    %v516 = vtanh.pop %v476
    %v517 = vmul.f32 %v500, %v321
    %519 = vrot.lane.b32.xlu0 %v516, 64
    %v520 = vpop.permute.xlu0 %519
    %v522 = vmul.f32 %v500, %v520
    %524 = vrot.lane.b32.xlu0 %v522, 64
    %v525 = vpop.permute.xlu0 %524
    %v527 = vadd.f32 %v517, %v525
    %v528 = vtanh.pop %v527
    %530 = vrot.lane.b32.xlu0 %v528, 64
    %v531 = vpop.permute.xlu0 %530
    %v533 = vmul.f32 %v515, %v531
    %s534 = scalar_lea.vmem [#allocation2], 8
    %535 = vst.msk [vmem:[%s534] sm:$0xff] %vm129, %v533
    %s536 = scalar_lea.vmem [#allocation4], 32
    %v537 = vld [vmem:[%s536] sm:$0xff]
    %v538 = vld [vmem:[%s536 + $0x8] sm:$0xff]
    %v540 = vsel %vm129, %v432, 0
    %542 = vmatpush.msra.mxu0 0.0
    %543 = vmatpush.msra.mxu0 0.0
    %544 = vmatpush.msra.mxu0 0.0
    %545 = vmatpush.msra.mxu0 0.0
    %546 = vmatpush.msra.mxu0 0.0
    %547 = vmatpush.msra.mxu0 0.0
    %548 = vmatpush.msra.mxu0 0.0
    %549 = vmatpush.msra.mxu0 0.0
    %550 = vmatpush.msra.mxu0 %v87
    %551 = vmatpush.msra.mxu0 %v85
    %552 = vmatpush.msra.mxu0 %v83
    %553 = vmatpush.msra.mxu0 %v81
    %554 = vmatpush.msra.mxu0 %v79
    %555 = vmatpush.msra.mxu0 %v77
    %556 = vmatpush.msra.mxu0 %v75
    %557 = vmatpush.msra.mxu0 %v73
    %558 = vmatmul.f32.gmra.mxu0 %v540
    %v559 = vpop.f32.mrf.mxu0
    %v560 = vadd.f32 0.0, %v559
    %561 = vdwg.mxu0
    %562 = vmatpush.msra.mxu0 0.0
    %563 = vmatpush.msra.mxu0 0.0
    %564 = vmatpush.msra.mxu0 0.0
    %565 = vmatpush.msra.mxu0 0.0
    %566 = vmatpush.msra.mxu0 0.0
    %567 = vmatpush.msra.mxu0 0.0
    %568 = vmatpush.msra.mxu0 0.0
    %569 = vmatpush.msra.mxu0 0.0
    %570 = vmatpush.msra.mxu0 %v88
    %571 = vmatpush.msra.mxu0 %v86
    %572 = vmatpush.msra.mxu0 %v84
    %573 = vmatpush.msra.mxu0 %v82
    %574 = vmatpush.msra.mxu0 %v80
    %575 = vmatpush.msra.mxu0 %v78
    %576 = vmatpush.msra.mxu0 %v76
    %577 = vmatpush.msra.mxu0 %v74
    %578 = vmatmul.f32.gmra.mxu0 %v540
    %v579 = vpop.f32.mrf.mxu0
    %v580 = vadd.f32 0.0, %v579
    %581 = vdwg.mxu0
    %v582 = vadd.f32 %v537, %v560
    %v583 = vadd.f32 %v538, %v580
    %v584 = vxor.u32 %v582, 2147483648
    %v585 = vxor.u32 %v583, 2147483648
    %v586 = vmul.f32 %v584, 1.442695
    %v587 = vpow.pop %v586
    %v588 = vmul.f32 %v585, 1.442695
    %v589 = vpow.pop %v588
    %v590 = vadd.f32 %v587, 1.0
    %v591 = vadd.f32 %v589, 1.0
    %v592 = vrcp.pop %v590
    %v593 = vmul.f32 %v590, %v592
    %v594 = vsub.f32 1.0, %v593
    %v595 = vmul.f32 %v592, %v594
    %v596 = vadd.f32 %v592, %v595
    %vm597 = vweird.f32 %v590
    %vm598 = vweird.f32 %v592
    %vm599 = vmor %vm597, %vm598
    %v600 = vsel %vm599, %v592, %v596
    %v601 = vand.u32 2147483647, %v590
    %vm602 = vcmp.eq.f32.partialorder %v601, 8.507059e+37
    %v603 = vand.u32 %v590, 2147483648
    %v604 = vor.u32 1.1754944e-38, %v603
    %v605 = vsel %vm602, %v604, %v600
    %v606 = vmul.f32 1.0, %v605
    %v607 = vrcp.pop %v591
    %v608 = vmul.f32 %v591, %v607
    %v609 = vsub.f32 1.0, %v608
    %v610 = vmul.f32 %v607, %v609
    %v611 = vadd.f32 %v607, %v610
    %vm612 = vweird.f32 %v591
    %vm613 = vweird.f32 %v607
    %vm614 = vmor %vm612, %vm613
    %v615 = vsel %vm614, %v607, %v611
    %v616 = vand.u32 2147483647, %v591
    %vm617 = vcmp.eq.f32.partialorder %v616, 8.507059e+37
    %v618 = vand.u32 %v591, 2147483648
    %v619 = vor.u32 1.1754944e-38, %v618
    %v620 = vsel %vm617, %v619, %v615
    %v621 = vmul.f32 1.0, %v620
    %v622 = vtanh.pop %v583
    %v623 = vmul.f32 %v606, %v426
    %625 = vrot.lane.b32.xlu0 %v622, 64
    %v626 = vpop.permute.xlu0 %625
    %v628 = vmul.f32 %v606, %v626
    %630 = vrot.lane.b32.xlu0 %v628, 64
    %v631 = vpop.permute.xlu0 %630
    %v633 = vadd.f32 %v623, %v631
    %v634 = vtanh.pop %v633
    %636 = vrot.lane.b32.xlu0 %v634, 64
    %v637 = vpop.permute.xlu0 %636
    %v639 = vmul.f32 %v621, %v637
    %641 = vrot.lane.b32.xlu0 %v533, 64
    %v642 = vpop.permute.xlu0 %641
    %v644 = vsel %vm129, %v639, %v642
    %645 = vmatpush.msra.mxu0 %v119
    %646 = vmatpush.msra.mxu0 %v117
    %647 = vmatpush.msra.mxu0 %v115
    %648 = vmatpush.msra.mxu0 %v113
    %649 = vmatpush.msra.mxu0 %v111
    %650 = vmatpush.msra.mxu0 %v109
    %651 = vmatpush.msra.mxu0 %v107
    %652 = vmatpush.msra.mxu0 %v105
    %653 = vmatpush.msra.mxu0 %v103
    %654 = vmatpush.msra.mxu0 %v101
    %655 = vmatpush.msra.mxu0 %v99
    %656 = vmatpush.msra.mxu0 %v97
    %657 = vmatpush.msra.mxu0 %v95
    %658 = vmatpush.msra.mxu0 %v93
    %659 = vmatpush.msra.mxu0 %v91
    %660 = vmatpush.msra.mxu0 %v89
    %661 = vmatmul.f32.gmra.mxu0 %v644
    %v662 = vpop.f32.mrf.mxu0
    %v663 = vadd.f32 %v123, %v662
    %664 = vdwg.mxu0
    %665 = vmatpush.msra.mxu0 %v120
    %666 = vmatpush.msra.mxu0 %v118
    %667 = vmatpush.msra.mxu0 %v116
    %668 = vmatpush.msra.mxu0 %v114
    %669 = vmatpush.msra.mxu0 %v112
    %670 = vmatpush.msra.mxu0 %v110
    %671 = vmatpush.msra.mxu0 %v108
    %672 = vmatpush.msra.mxu0 %v106
    %673 = vmatpush.msra.mxu0 %v104
    %674 = vmatpush.msra.mxu0 %v102
    %675 = vmatpush.msra.mxu0 %v100
    %676 = vmatpush.msra.mxu0 %v98
    %677 = vmatpush.msra.mxu0 %v96
    %678 = vmatpush.msra.mxu0 %v94
    %679 = vmatpush.msra.mxu0 %v92
    %680 = vmatpush.msra.mxu0 %v90
    %681 = vmatmul.f32.gmra.mxu0 %v644
    %v682 = vpop.f32.mrf.mxu0
    %v683 = vadd.f32 %v124, %v682
    %684 = vdwg.mxu0
    %v685 = vxor.u32 %v663, 2147483648
    %v686 = vxor.u32 %v683, 2147483648
    %v687 = vmul.f32 %v685, 1.442695
    %v688 = vpow.pop %v687
    %v689 = vmul.f32 %v686, 1.442695
    %v690 = vpow.pop %v689
    %v691 = vadd.f32 %v688, 1.0
    %v692 = vadd.f32 %v690, 1.0
    %v693 = vrcp.pop %v691
    %v694 = vmul.f32 %v691, %v693
    %v695 = vsub.f32 1.0, %v694
    %v696 = vmul.f32 %v693, %v695
    %v697 = vadd.f32 %v693, %v696
    %vm698 = vweird.f32 %v691
    %vm699 = vweird.f32 %v693
    %vm700 = vmor %vm698, %vm699
    %v701 = vsel %vm700, %v693, %v697
    %v702 = vand.u32 2147483647, %v691
    %vm703 = vcmp.eq.f32.partialorder %v702, 8.507059e+37
    %v704 = vand.u32 %v691, 2147483648
    %v705 = vor.u32 1.1754944e-38, %v704
    %v706 = vsel %vm703, %v705, %v701
    %v707 = vmul.f32 1.0, %v706
    %v708 = vrcp.pop %v692
    %v709 = vmul.f32 %v692, %v708
    %v710 = vsub.f32 1.0, %v709
    %v711 = vmul.f32 %v708, %v710
    %v712 = vadd.f32 %v708, %v711
    %vm713 = vweird.f32 %v692
    %vm714 = vweird.f32 %v708
    %vm715 = vmor %vm713, %vm714
    %v716 = vsel %vm715, %v708, %v712
    %v717 = vand.u32 2147483647, %v692
    %vm718 = vcmp.eq.f32.partialorder %v717, 8.507059e+37
    %v719 = vand.u32 %v692, 2147483648
    %v720 = vor.u32 1.1754944e-38, %v719
    %v721 = vsel %vm718, %v720, %v716
    %v722 = vmul.f32 1.0, %v721
    %v723 = vtanh.pop %v683
    %v724 = vmul.f32 %v707, %v527
    %726 = vrot.lane.b32.xlu0 %v723, 64
    %v727 = vpop.permute.xlu0 %726
    %v729 = vmul.f32 %v707, %v727
    %731 = vrot.lane.b32.xlu0 %v729, 64
    %v732 = vpop.permute.xlu0 %731
    %v734 = vadd.f32 %v724, %v732
    %v735 = vtanh.pop %v734
    %737 = vrot.lane.b32.xlu0 %v735, 64
    %v738 = vpop.permute.xlu0 %737
    %v740 = vmul.f32 %v722, %v738
    %s741 = scalar_lea.vmem [#allocation2], 16
    %742 = vst.msk [vmem:[%s741] sm:$0xff] %vm129, %v740
    %s743 = scalar_lea.vmem [#allocation4], 48
    %v744 = vld [vmem:[%s743] sm:$0xff]
    %v745 = vld [vmem:[%s743 + $0x8] sm:$0xff]
    %v747 = vsel %vm129, %v639, 0
    %749 = vmatpush.msra.mxu0 0.0
    %750 = vmatpush.msra.mxu0 0.0
    %751 = vmatpush.msra.mxu0 0.0
    %752 = vmatpush.msra.mxu0 0.0
    %753 = vmatpush.msra.mxu0 0.0
    %754 = vmatpush.msra.mxu0 0.0
    %755 = vmatpush.msra.mxu0 0.0
    %756 = vmatpush.msra.mxu0 0.0
    %757 = vmatpush.msra.mxu0 %v87
    %758 = vmatpush.msra.mxu0 %v85
    %759 = vmatpush.msra.mxu0 %v83
    %760 = vmatpush.msra.mxu0 %v81
    %761 = vmatpush.msra.mxu0 %v79
    %762 = vmatpush.msra.mxu0 %v77
    %763 = vmatpush.msra.mxu0 %v75
    %764 = vmatpush.msra.mxu0 %v73
    %765 = vmatmul.f32.gmra.mxu0 %v747
    %v766 = vpop.f32.mrf.mxu0
    %v767 = vadd.f32 0.0, %v766
    %768 = vdwg.mxu0
    %769 = vmatpush.msra.mxu0 0.0
    %770 = vmatpush.msra.mxu0 0.0
    %771 = vmatpush.msra.mxu0 0.0
    %772 = vmatpush.msra.mxu0 0.0
    %773 = vmatpush.msra.mxu0 0.0
    %774 = vmatpush.msra.mxu0 0.0
    %775 = vmatpush.msra.mxu0 0.0
    %776 = vmatpush.msra.mxu0 0.0
    %777 = vmatpush.msra.mxu0 %v88
    %778 = vmatpush.msra.mxu0 %v86
    %779 = vmatpush.msra.mxu0 %v84
    %780 = vmatpush.msra.mxu0 %v82
    %781 = vmatpush.msra.mxu0 %v80
    %782 = vmatpush.msra.mxu0 %v78
    %783 = vmatpush.msra.mxu0 %v76
    %784 = vmatpush.msra.mxu0 %v74
    %785 = vmatmul.f32.gmra.mxu0 %v747
    %v786 = vpop.f32.mrf.mxu0
    %v787 = vadd.f32 0.0, %v786
    %788 = vdwg.mxu0
    %v789 = vadd.f32 %v744, %v767
    %v790 = vadd.f32 %v745, %v787
    %v791 = vxor.u32 %v789, 2147483648
    %v792 = vxor.u32 %v790, 2147483648
    %v793 = vmul.f32 %v791, 1.442695
    %v794 = vpow.pop %v793
    %v795 = vmul.f32 %v792, 1.442695
    %v796 = vpow.pop %v795
    %v797 = vadd.f32 %v794, 1.0
    %v798 = vadd.f32 %v796, 1.0
    %v799 = vrcp.pop %v797
    %v800 = vmul.f32 %v797, %v799
    %v801 = vsub.f32 1.0, %v800
    %v802 = vmul.f32 %v799, %v801
    %v803 = vadd.f32 %v799, %v802
    %vm804 = vweird.f32 %v797
    %vm805 = vweird.f32 %v799
    %vm806 = vmor %vm804, %vm805
    %v807 = vsel %vm806, %v799, %v803
    %v808 = vand.u32 2147483647, %v797
    %vm809 = vcmp.eq.f32.partialorder %v808, 8.507059e+37
    %v810 = vand.u32 %v797, 2147483648
    %v811 = vor.u32 1.1754944e-38, %v810
    %v812 = vsel %vm809, %v811, %v807
    %v813 = vmul.f32 1.0, %v812
    %v814 = vrcp.pop %v798
    %v815 = vmul.f32 %v798, %v814
    %v816 = vsub.f32 1.0, %v815
    %v817 = vmul.f32 %v814, %v816
    %v818 = vadd.f32 %v814, %v817
    %vm819 = vweird.f32 %v798
    %vm820 = vweird.f32 %v814
    %vm821 = vmor %vm819, %vm820
    %v822 = vsel %vm821, %v814, %v818
    %v823 = vand.u32 2147483647, %v798
    %vm824 = vcmp.eq.f32.partialorder %v823, 8.507059e+37
    %v825 = vand.u32 %v798, 2147483648
    %v826 = vor.u32 1.1754944e-38, %v825
    %v827 = vsel %vm824, %v826, %v822
    %v828 = vmul.f32 1.0, %v827
    %v829 = vtanh.pop %v790
    %v830 = vmul.f32 %v813, %v633
    %832 = vrot.lane.b32.xlu0 %v829, 64
    %v833 = vpop.permute.xlu0 %832
    %v835 = vmul.f32 %v813, %v833
    %837 = vrot.lane.b32.xlu0 %v835, 64
    %v838 = vpop.permute.xlu0 %837
    %v840 = vadd.f32 %v830, %v838
    %v841 = vtanh.pop %v840
    %843 = vrot.lane.b32.xlu0 %v841, 64
    %v844 = vpop.permute.xlu0 %843
    %v846 = vmul.f32 %v828, %v844
    %848 = vrot.lane.b32.xlu0 %v740, 64
    %v849 = vpop.permute.xlu0 %848
    %v851 = vsel %vm129, %v846, %v849
    %852 = vmatpush.msra.mxu0 %v119
    %853 = vmatpush.msra.mxu0 %v117
    %854 = vmatpush.msra.mxu0 %v115
    %855 = vmatpush.msra.mxu0 %v113
    %856 = vmatpush.msra.mxu0 %v111
    %857 = vmatpush.msra.mxu0 %v109
    %858 = vmatpush.msra.mxu0 %v107
    %859 = vmatpush.msra.mxu0 %v105
    %860 = vmatpush.msra.mxu0 %v103
    %861 = vmatpush.msra.mxu0 %v101
    %862 = vmatpush.msra.mxu0 %v99
    %863 = vmatpush.msra.mxu0 %v97
    %864 = vmatpush.msra.mxu0 %v95
    %865 = vmatpush.msra.mxu0 %v93
    %866 = vmatpush.msra.mxu0 %v91
    %867 = vmatpush.msra.mxu0 %v89
    %868 = vmatmul.f32.gmra.mxu0 %v851
    %v869 = vpop.f32.mrf.mxu0
    %v870 = vadd.f32 %v123, %v869
    %871 = vdwg.mxu0
    %872 = vmatpush.msra.mxu0 %v120
    %873 = vmatpush.msra.mxu0 %v118
    %874 = vmatpush.msra.mxu0 %v116
    %875 = vmatpush.msra.mxu0 %v114
    %876 = vmatpush.msra.mxu0 %v112
    %877 = vmatpush.msra.mxu0 %v110
    %878 = vmatpush.msra.mxu0 %v108
    %879 = vmatpush.msra.mxu0 %v106
    %880 = vmatpush.msra.mxu0 %v104
    %881 = vmatpush.msra.mxu0 %v102
    %882 = vmatpush.msra.mxu0 %v100
    %883 = vmatpush.msra.mxu0 %v98
    %884 = vmatpush.msra.mxu0 %v96
    %885 = vmatpush.msra.mxu0 %v94
    %886 = vmatpush.msra.mxu0 %v92
    %887 = vmatpush.msra.mxu0 %v90
    %888 = vmatmul.f32.gmra.mxu0 %v851
    %v889 = vpop.f32.mrf.mxu0
    %v890 = vadd.f32 %v124, %v889
    %891 = vdwg.mxu0
    %v892 = vxor.u32 %v870, 2147483648
    %v893 = vxor.u32 %v890, 2147483648
    %v894 = vmul.f32 %v892, 1.442695
    %v895 = vpow.pop %v894
    %v896 = vmul.f32 %v893, 1.442695
    %v897 = vpow.pop %v896
    %v898 = vadd.f32 %v895, 1.0
    %v899 = vadd.f32 %v897, 1.0
    %v900 = vrcp.pop %v898
    %v901 = vmul.f32 %v898, %v900
    %v902 = vsub.f32 1.0, %v901
    %v903 = vmul.f32 %v900, %v902
    %v904 = vadd.f32 %v900, %v903
    %vm905 = vweird.f32 %v898
    %vm906 = vweird.f32 %v900
    %vm907 = vmor %vm905, %vm906
    %v908 = vsel %vm907, %v900, %v904
    %v909 = vand.u32 2147483647, %v898
    %vm910 = vcmp.eq.f32.partialorder %v909, 8.507059e+37
    %v911 = vand.u32 %v898, 2147483648
    %v912 = vor.u32 1.1754944e-38, %v911
    %v913 = vsel %vm910, %v912, %v908
    %v914 = vmul.f32 1.0, %v913
    %v915 = vrcp.pop %v899
    %v916 = vmul.f32 %v899, %v915
    %v917 = vsub.f32 1.0, %v916
    %v918 = vmul.f32 %v915, %v917
    %v919 = vadd.f32 %v915, %v918
    %vm920 = vweird.f32 %v899
    %vm921 = vweird.f32 %v915
    %vm922 = vmor %vm920, %vm921
    %v923 = vsel %vm922, %v915, %v919
    %v924 = vand.u32 2147483647, %v899
    %vm925 = vcmp.eq.f32.partialorder %v924, 8.507059e+37
    %v926 = vand.u32 %v899, 2147483648
    %v927 = vor.u32 1.1754944e-38, %v926
    %v928 = vsel %vm925, %v927, %v923
    %v929 = vmul.f32 1.0, %v928
    %v930 = vtanh.pop %v890
    %v931 = vmul.f32 %v914, %v734
    %933 = vrot.lane.b32.xlu0 %v930, 64
    %v934 = vpop.permute.xlu0 %933
    %v936 = vmul.f32 %v914, %v934
    %938 = vrot.lane.b32.xlu0 %v936, 64
    %v939 = vpop.permute.xlu0 %938
    %v941 = vadd.f32 %v931, %v939
    %v942 = vtanh.pop %v941
    %944 = vrot.lane.b32.xlu0 %v942, 64
    %v945 = vpop.permute.xlu0 %944
    %v947 = vmul.f32 %v929, %v945
    %s948 = scalar_lea.vmem [#allocation2], 24
    %949 = vst.msk [vmem:[%s948] sm:$0xff] %vm129, %v947
    %s950 = scalar_lea.vmem [#allocation4], 64
    %v951 = vld [vmem:[%s950] sm:$0xff]
    %v952 = vld [vmem:[%s950 + $0x8] sm:$0xff]
    %v954 = vsel %vm129, %v846, 0
    %956 = vmatpush.msra.mxu0 0.0
    %957 = vmatpush.msra.mxu0 0.0
    %958 = vmatpush.msra.mxu0 0.0
    %959 = vmatpush.msra.mxu0 0.0
    %960 = vmatpush.msra.mxu0 0.0
    %961 = vmatpush.msra.mxu0 0.0
    %962 = vmatpush.msra.mxu0 0.0
    %963 = vmatpush.msra.mxu0 0.0
    %964 = vmatpush.msra.mxu0 %v87
    %965 = vmatpush.msra.mxu0 %v85
    %966 = vmatpush.msra.mxu0 %v83
    %967 = vmatpush.msra.mxu0 %v81
    %968 = vmatpush.msra.mxu0 %v79
    %969 = vmatpush.msra.mxu0 %v77
    %970 = vmatpush.msra.mxu0 %v75
    %971 = vmatpush.msra.mxu0 %v73
    %972 = vmatmul.f32.gmra.mxu0 %v954
    %v973 = vpop.f32.mrf.mxu0
    %v974 = vadd.f32 0.0, %v973
    %975 = vdwg.mxu0
    %976 = vmatpush.msra.mxu0 0.0
    %977 = vmatpush.msra.mxu0 0.0
    %978 = vmatpush.msra.mxu0 0.0
    %979 = vmatpush.msra.mxu0 0.0
    %980 = vmatpush.msra.mxu0 0.0
    %981 = vmatpush.msra.mxu0 0.0
    %982 = vmatpush.msra.mxu0 0.0
    %983 = vmatpush.msra.mxu0 0.0
    %984 = vmatpush.msra.mxu0 %v88
    %985 = vmatpush.msra.mxu0 %v86
    %986 = vmatpush.msra.mxu0 %v84
    %987 = vmatpush.msra.mxu0 %v82
    %988 = vmatpush.msra.mxu0 %v80
    %989 = vmatpush.msra.mxu0 %v78
    %990 = vmatpush.msra.mxu0 %v76
    %991 = vmatpush.msra.mxu0 %v74
    %992 = vmatmul.f32.gmra.mxu0 %v954
    %v993 = vpop.f32.mrf.mxu0
    %v994 = vadd.f32 0.0, %v993
    %995 = vdwg.mxu0
    %v996 = vadd.f32 %v951, %v974
    %v997 = vadd.f32 %v952, %v994
    %v998 = vxor.u32 %v996, 2147483648
    %v999 = vxor.u32 %v997, 2147483648
    %v1000 = vmul.f32 %v998, 1.442695
    %v1001 = vpow.pop %v1000
    %v1002 = vmul.f32 %v999, 1.442695
    %v1003 = vpow.pop %v1002
    %v1004 = vadd.f32 %v1001, 1.0
    %v1005 = vadd.f32 %v1003, 1.0
    %v1006 = vrcp.pop %v1004
    %v1007 = vmul.f32 %v1004, %v1006
    %v1008 = vsub.f32 1.0, %v1007
    %v1009 = vmul.f32 %v1006, %v1008
    %v1010 = vadd.f32 %v1006, %v1009
    %vm1011 = vweird.f32 %v1004
    %vm1012 = vweird.f32 %v1006
    %vm1013 = vmor %vm1011, %vm1012
    %v1014 = vsel %vm1013, %v1006, %v1010
    %v1015 = vand.u32 2147483647, %v1004
    %vm1016 = vcmp.eq.f32.partialorder %v1015, 8.507059e+37
    %v1017 = vand.u32 %v1004, 2147483648
    %v1018 = vor.u32 1.1754944e-38, %v1017
    %v1019 = vsel %vm1016, %v1018, %v1014
    %v1020 = vmul.f32 1.0, %v1019
    %v1021 = vrcp.pop %v1005
    %v1022 = vmul.f32 %v1005, %v1021
    %v1023 = vsub.f32 1.0, %v1022
    %v1024 = vmul.f32 %v1021, %v1023
    %v1025 = vadd.f32 %v1021, %v1024
    %vm1026 = vweird.f32 %v1005
    %vm1027 = vweird.f32 %v1021
    %vm1028 = vmor %vm1026, %vm1027
    %v1029 = vsel %vm1028, %v1021, %v1025
    %v1030 = vand.u32 2147483647, %v1005
    %vm1031 = vcmp.eq.f32.partialorder %v1030, 8.507059e+37
    %v1032 = vand.u32 %v1005, 2147483648
    %v1033 = vor.u32 1.1754944e-38, %v1032
    %v1034 = vsel %vm1031, %v1033, %v1029
    %v1035 = vmul.f32 1.0, %v1034
    %v1036 = vtanh.pop %v997
    %v1037 = vmul.f32 %v1020, %v840
    %1039 = vrot.lane.b32.xlu0 %v1036, 64
    %v1040 = vpop.permute.xlu0 %1039
    %v1042 = vmul.f32 %v1020, %v1040
    %1044 = vrot.lane.b32.xlu0 %v1042, 64
    %v1045 = vpop.permute.xlu0 %1044
    %v1047 = vadd.f32 %v1037, %v1045
    %v1048 = vtanh.pop %v1047
    %1050 = vrot.lane.b32.xlu0 %v1048, 64
    %v1051 = vpop.permute.xlu0 %1050
    %v1053 = vmul.f32 %v1035, %v1051
    %1055 = vrot.lane.b32.xlu0 %v947, 64
    %v1056 = vpop.permute.xlu0 %1055
    %v1058 = vsel %vm129, %v1053, %v1056
    %1059 = vmatpush.msra.mxu0 %v119
    %1060 = vmatpush.msra.mxu0 %v117
    %1061 = vmatpush.msra.mxu0 %v115
    %1062 = vmatpush.msra.mxu0 %v113
    %1063 = vmatpush.msra.mxu0 %v111
    %1064 = vmatpush.msra.mxu0 %v109
    %1065 = vmatpush.msra.mxu0 %v107
    %1066 = vmatpush.msra.mxu0 %v105
    %1067 = vmatpush.msra.mxu0 %v103
    %1068 = vmatpush.msra.mxu0 %v101
    %1069 = vmatpush.msra.mxu0 %v99
    %1070 = vmatpush.msra.mxu0 %v97
    %1071 = vmatpush.msra.mxu0 %v95
    %1072 = vmatpush.msra.mxu0 %v93
    %1073 = vmatpush.msra.mxu0 %v91
    %1074 = vmatpush.msra.mxu0 %v89
    %1075 = vmatmul.f32.gmra.mxu0 %v1058
    %v1076 = vpop.f32.mrf.mxu0
    %v1077 = vadd.f32 %v123, %v1076
    %1078 = vdwg.mxu0
    %1079 = vmatpush.msra.mxu0 %v120
    %1080 = vmatpush.msra.mxu0 %v118
    %1081 = vmatpush.msra.mxu0 %v116
    %1082 = vmatpush.msra.mxu0 %v114
    %1083 = vmatpush.msra.mxu0 %v112
    %1084 = vmatpush.msra.mxu0 %v110
    %1085 = vmatpush.msra.mxu0 %v108
    %1086 = vmatpush.msra.mxu0 %v106
    %1087 = vmatpush.msra.mxu0 %v104
    %1088 = vmatpush.msra.mxu0 %v102
    %1089 = vmatpush.msra.mxu0 %v100
    %1090 = vmatpush.msra.mxu0 %v98
    %1091 = vmatpush.msra.mxu0 %v96
    %1092 = vmatpush.msra.mxu0 %v94
    %1093 = vmatpush.msra.mxu0 %v92
    %1094 = vmatpush.msra.mxu0 %v90
    %1095 = vmatmul.f32.gmra.mxu0 %v1058
    %v1096 = vpop.f32.mrf.mxu0
    %v1097 = vadd.f32 %v124, %v1096
    %1098 = vdwg.mxu0
    %v1099 = vxor.u32 %v1077, 2147483648
    %v1100 = vxor.u32 %v1097, 2147483648
    %v1101 = vmul.f32 %v1099, 1.442695
    %v1102 = vpow.pop %v1101
    %v1103 = vmul.f32 %v1100, 1.442695
    %v1104 = vpow.pop %v1103
    %v1105 = vadd.f32 %v1102, 1.0
    %v1106 = vadd.f32 %v1104, 1.0
    %v1107 = vrcp.pop %v1105
    %v1108 = vmul.f32 %v1105, %v1107
    %v1109 = vsub.f32 1.0, %v1108
    %v1110 = vmul.f32 %v1107, %v1109
    %v1111 = vadd.f32 %v1107, %v1110
    %vm1112 = vweird.f32 %v1105
    %vm1113 = vweird.f32 %v1107
    %vm1114 = vmor %vm1112, %vm1113
    %v1115 = vsel %vm1114, %v1107, %v1111
    %v1116 = vand.u32 2147483647, %v1105
    %vm1117 = vcmp.eq.f32.partialorder %v1116, 8.507059e+37
    %v1118 = vand.u32 %v1105, 2147483648
    %v1119 = vor.u32 1.1754944e-38, %v1118
    %v1120 = vsel %vm1117, %v1119, %v1115
    %v1121 = vmul.f32 1.0, %v1120
    %v1122 = vrcp.pop %v1106
    %v1123 = vmul.f32 %v1106, %v1122
    %v1124 = vsub.f32 1.0, %v1123
    %v1125 = vmul.f32 %v1122, %v1124
    %v1126 = vadd.f32 %v1122, %v1125
    %vm1127 = vweird.f32 %v1106
    %vm1128 = vweird.f32 %v1122
    %vm1129 = vmor %vm1127, %vm1128
    %v1130 = vsel %vm1129, %v1122, %v1126
    %v1131 = vand.u32 2147483647, %v1106
    %vm1132 = vcmp.eq.f32.partialorder %v1131, 8.507059e+37
    %v1133 = vand.u32 %v1106, 2147483648
    %v1134 = vor.u32 1.1754944e-38, %v1133
    %v1135 = vsel %vm1132, %v1134, %v1130
    %v1136 = vmul.f32 1.0, %v1135
    %v1137 = vtanh.pop %v1097
    %v1138 = vmul.f32 %v1121, %v941
    %1140 = vrot.lane.b32.xlu0 %v1137, 64
    %v1141 = vpop.permute.xlu0 %1140
    %v1143 = vmul.f32 %v1121, %v1141
    %1145 = vrot.lane.b32.xlu0 %v1143, 64
    %v1146 = vpop.permute.xlu0 %1145
    %v1148 = vadd.f32 %v1138, %v1146
    %v1149 = vtanh.pop %v1148
    %1151 = vrot.lane.b32.xlu0 %v1149, 64
    %v1152 = vpop.permute.xlu0 %1151
    %v1154 = vmul.f32 %v1136, %v1152
    %s1155 = scalar_lea.vmem [#allocation2], 32
    %1156 = vst.msk [vmem:[%s1155] sm:$0xff] %vm129, %v1154
    %s1157 = scalar_lea.vmem [#allocation4], 80
    %v1158 = vld [vmem:[%s1157] sm:$0xff]
    %v1159 = vld [vmem:[%s1157 + $0x8] sm:$0xff]
    %v1161 = vsel %vm129, %v1053, 0
    %1163 = vmatpush.msra.mxu0 0.0
    %1164 = vmatpush.msra.mxu0 0.0
    %1165 = vmatpush.msra.mxu0 0.0
    %1166 = vmatpush.msra.mxu0 0.0
    %1167 = vmatpush.msra.mxu0 0.0
    %1168 = vmatpush.msra.mxu0 0.0
    %1169 = vmatpush.msra.mxu0 0.0
    %1170 = vmatpush.msra.mxu0 0.0
    %1171 = vmatpush.msra.mxu0 %v87
    %1172 = vmatpush.msra.mxu0 %v85
    %1173 = vmatpush.msra.mxu0 %v83
    %1174 = vmatpush.msra.mxu0 %v81
    %1175 = vmatpush.msra.mxu0 %v79
    %1176 = vmatpush.msra.mxu0 %v77
    %1177 = vmatpush.msra.mxu0 %v75
    %1178 = vmatpush.msra.mxu0 %v73
    %1179 = vmatmul.f32.gmra.mxu0 %v1161
    %v1180 = vpop.f32.mrf.mxu0
    %v1181 = vadd.f32 0.0, %v1180
    %1182 = vdwg.mxu0
    %1183 = vmatpush.msra.mxu0 0.0
    %1184 = vmatpush.msra.mxu0 0.0
    %1185 = vmatpush.msra.mxu0 0.0
    %1186 = vmatpush.msra.mxu0 0.0
    %1187 = vmatpush.msra.mxu0 0.0
    %1188 = vmatpush.msra.mxu0 0.0
    %1189 = vmatpush.msra.mxu0 0.0
    %1190 = vmatpush.msra.mxu0 0.0
    %1191 = vmatpush.msra.mxu0 %v88
    %1192 = vmatpush.msra.mxu0 %v86
    %1193 = vmatpush.msra.mxu0 %v84
    %1194 = vmatpush.msra.mxu0 %v82
    %1195 = vmatpush.msra.mxu0 %v80
    %1196 = vmatpush.msra.mxu0 %v78
    %1197 = vmatpush.msra.mxu0 %v76
    %1198 = vmatpush.msra.mxu0 %v74
    %1199 = vmatmul.f32.gmra.mxu0 %v1161
    %v1200 = vpop.f32.mrf.mxu0
    %v1201 = vadd.f32 0.0, %v1200
    %1202 = vdwg.mxu0
    %v1203 = vadd.f32 %v1158, %v1181
    %v1204 = vadd.f32 %v1159, %v1201
    %v1205 = vxor.u32 %v1203, 2147483648
    %v1206 = vxor.u32 %v1204, 2147483648
    %v1207 = vmul.f32 %v1205, 1.442695
    %v1208 = vpow.pop %v1207
    %v1209 = vmul.f32 %v1206, 1.442695
    %v1210 = vpow.pop %v1209
    %v1211 = vadd.f32 %v1208, 1.0
    %v1212 = vadd.f32 %v1210, 1.0
    %v1213 = vrcp.pop %v1211
    %v1214 = vmul.f32 %v1211, %v1213
    %v1215 = vsub.f32 1.0, %v1214
    %v1216 = vmul.f32 %v1213, %v1215
    %v1217 = vadd.f32 %v1213, %v1216
    %vm1218 = vweird.f32 %v1211
    %vm1219 = vweird.f32 %v1213
    %vm1220 = vmor %vm1218, %vm1219
    %v1221 = vsel %vm1220, %v1213, %v1217
    %v1222 = vand.u32 2147483647, %v1211
    %vm1223 = vcmp.eq.f32.partialorder %v1222, 8.507059e+37
    %v1224 = vand.u32 %v1211, 2147483648
    %v1225 = vor.u32 1.1754944e-38, %v1224
    %v1226 = vsel %vm1223, %v1225, %v1221
    %v1227 = vmul.f32 1.0, %v1226
    %v1228 = vrcp.pop %v1212
    %v1229 = vmul.f32 %v1212, %v1228
    %v1230 = vsub.f32 1.0, %v1229
    %v1231 = vmul.f32 %v1228, %v1230
    %v1232 = vadd.f32 %v1228, %v1231
    %vm1233 = vweird.f32 %v1212
    %vm1234 = vweird.f32 %v1228
    %vm1235 = vmor %vm1233, %vm1234
    %v1236 = vsel %vm1235, %v1228, %v1232
    %v1237 = vand.u32 2147483647, %v1212
    %vm1238 = vcmp.eq.f32.partialorder %v1237, 8.507059e+37
    %v1239 = vand.u32 %v1212, 2147483648
    %v1240 = vor.u32 1.1754944e-38, %v1239
    %v1241 = vsel %vm1238, %v1240, %v1236
    %v1242 = vmul.f32 1.0, %v1241
    %v1243 = vtanh.pop %v1204
    %v1244 = vmul.f32 %v1227, %v1047
    %1246 = vrot.lane.b32.xlu0 %v1243, 64
    %v1247 = vpop.permute.xlu0 %1246
    %v1249 = vmul.f32 %v1227, %v1247
    %1251 = vrot.lane.b32.xlu0 %v1249, 64
    %v1252 = vpop.permute.xlu0 %1251
    %v1254 = vadd.f32 %v1244, %v1252
    %v1255 = vtanh.pop %v1254
    %1257 = vrot.lane.b32.xlu0 %v1255, 64
    %v1258 = vpop.permute.xlu0 %1257
    %v1260 = vmul.f32 %v1242, %v1258
    %1262 = vrot.lane.b32.xlu0 %v1154, 64
    %v1263 = vpop.permute.xlu0 %1262
    %v1265 = vsel %vm129, %v1260, %v1263
    %1266 = vmatpush.msra.mxu0 %v119
    %1267 = vmatpush.msra.mxu0 %v117
    %1268 = vmatpush.msra.mxu0 %v115
    %1269 = vmatpush.msra.mxu0 %v113
    %1270 = vmatpush.msra.mxu0 %v111
    %1271 = vmatpush.msra.mxu0 %v109
    %1272 = vmatpush.msra.mxu0 %v107
    %1273 = vmatpush.msra.mxu0 %v105
    %1274 = vmatpush.msra.mxu0 %v103
    %1275 = vmatpush.msra.mxu0 %v101
    %1276 = vmatpush.msra.mxu0 %v99
    %1277 = vmatpush.msra.mxu0 %v97
    %1278 = vmatpush.msra.mxu0 %v95
    %1279 = vmatpush.msra.mxu0 %v93
    %1280 = vmatpush.msra.mxu0 %v91
    %1281 = vmatpush.msra.mxu0 %v89
    %1282 = vmatmul.f32.gmra.mxu0 %v1265
    %v1283 = vpop.f32.mrf.mxu0
    %v1284 = vadd.f32 %v123, %v1283
    %1285 = vdwg.mxu0
    %1286 = vmatpush.msra.mxu0 %v120
    %1287 = vmatpush.msra.mxu0 %v118
    %1288 = vmatpush.msra.mxu0 %v116
    %1289 = vmatpush.msra.mxu0 %v114
    %1290 = vmatpush.msra.mxu0 %v112
    %1291 = vmatpush.msra.mxu0 %v110
    %1292 = vmatpush.msra.mxu0 %v108
    %1293 = vmatpush.msra.mxu0 %v106
    %1294 = vmatpush.msra.mxu0 %v104
    %1295 = vmatpush.msra.mxu0 %v102
    %1296 = vmatpush.msra.mxu0 %v100
    %1297 = vmatpush.msra.mxu0 %v98
    %1298 = vmatpush.msra.mxu0 %v96
    %1299 = vmatpush.msra.mxu0 %v94
    %1300 = vmatpush.msra.mxu0 %v92
    %1301 = vmatpush.msra.mxu0 %v90
    %1302 = vmatmul.f32.gmra.mxu0 %v1265
    %v1303 = vpop.f32.mrf.mxu0
    %v1304 = vadd.f32 %v124, %v1303
    %1305 = vdwg.mxu0
    %v1306 = vxor.u32 %v1284, 2147483648
    %v1307 = vxor.u32 %v1304, 2147483648
    %v1308 = vmul.f32 %v1306, 1.442695
    %v1309 = vpow.pop %v1308
    %v1310 = vmul.f32 %v1307, 1.442695
    %v1311 = vpow.pop %v1310
    %v1312 = vadd.f32 %v1309, 1.0
    %v1313 = vadd.f32 %v1311, 1.0
    %v1314 = vrcp.pop %v1312
    %v1315 = vmul.f32 %v1312, %v1314
    %v1316 = vsub.f32 1.0, %v1315
    %v1317 = vmul.f32 %v1314, %v1316
    %v1318 = vadd.f32 %v1314, %v1317
    %vm1319 = vweird.f32 %v1312
    %vm1320 = vweird.f32 %v1314
    %vm1321 = vmor %vm1319, %vm1320
    %v1322 = vsel %vm1321, %v1314, %v1318
    %v1323 = vand.u32 2147483647, %v1312
    %vm1324 = vcmp.eq.f32.partialorder %v1323, 8.507059e+37
    %v1325 = vand.u32 %v1312, 2147483648
    %v1326 = vor.u32 1.1754944e-38, %v1325
    %v1327 = vsel %vm1324, %v1326, %v1322
    %v1328 = vmul.f32 1.0, %v1327
    %v1329 = vrcp.pop %v1313
    %v1330 = vmul.f32 %v1313, %v1329
    %v1331 = vsub.f32 1.0, %v1330
    %v1332 = vmul.f32 %v1329, %v1331
    %v1333 = vadd.f32 %v1329, %v1332
    %vm1334 = vweird.f32 %v1313
    %vm1335 = vweird.f32 %v1329
    %vm1336 = vmor %vm1334, %vm1335
    %v1337 = vsel %vm1336, %v1329, %v1333
    %v1338 = vand.u32 2147483647, %v1313
    %vm1339 = vcmp.eq.f32.partialorder %v1338, 8.507059e+37
    %v1340 = vand.u32 %v1313, 2147483648
    %v1341 = vor.u32 1.1754944e-38, %v1340
    %v1342 = vsel %vm1339, %v1341, %v1337
    %v1343 = vmul.f32 1.0, %v1342
    %v1344 = vtanh.pop %v1304
    %v1345 = vmul.f32 %v1328, %v1148
    %1347 = vrot.lane.b32.xlu0 %v1344, 64
    %v1348 = vpop.permute.xlu0 %1347
    %v1350 = vmul.f32 %v1328, %v1348
    %1352 = vrot.lane.b32.xlu0 %v1350, 64
    %v1353 = vpop.permute.xlu0 %1352
    %v1355 = vadd.f32 %v1345, %v1353
    %v1356 = vtanh.pop %v1355
    %1358 = vrot.lane.b32.xlu0 %v1356, 64
    %v1359 = vpop.permute.xlu0 %1358
    %v1361 = vmul.f32 %v1343, %v1359
    %s1362 = scalar_lea.vmem [#allocation2], 40
    %1363 = vst.msk [vmem:[%s1362] sm:$0xff] %vm129, %v1361
    %s1364 = scalar_lea.vmem [#allocation4], 96
    %v1365 = vld [vmem:[%s1364] sm:$0xff]
    %v1366 = vld [vmem:[%s1364 + $0x8] sm:$0xff]
    %v1368 = vsel %vm129, %v1260, 0
    %1370 = vmatpush.msra.mxu0 0.0
    %1371 = vmatpush.msra.mxu0 0.0
    %1372 = vmatpush.msra.mxu0 0.0
    %1373 = vmatpush.msra.mxu0 0.0
    %1374 = vmatpush.msra.mxu0 0.0
    %1375 = vmatpush.msra.mxu0 0.0
    %1376 = vmatpush.msra.mxu0 0.0
    %1377 = vmatpush.msra.mxu0 0.0
    %1378 = vmatpush.msra.mxu0 %v87
    %1379 = vmatpush.msra.mxu0 %v85
    %1380 = vmatpush.msra.mxu0 %v83
    %1381 = vmatpush.msra.mxu0 %v81
    %1382 = vmatpush.msra.mxu0 %v79
    %1383 = vmatpush.msra.mxu0 %v77
    %1384 = vmatpush.msra.mxu0 %v75
    %1385 = vmatpush.msra.mxu0 %v73
    %1386 = vmatmul.f32.gmra.mxu0 %v1368
    %v1387 = vpop.f32.mrf.mxu0
    %v1388 = vadd.f32 0.0, %v1387
    %1389 = vdwg.mxu0
    %1390 = vmatpush.msra.mxu0 0.0
    %1391 = vmatpush.msra.mxu0 0.0
    %1392 = vmatpush.msra.mxu0 0.0
    %1393 = vmatpush.msra.mxu0 0.0
    %1394 = vmatpush.msra.mxu0 0.0
    %1395 = vmatpush.msra.mxu0 0.0
    %1396 = vmatpush.msra.mxu0 0.0
    %1397 = vmatpush.msra.mxu0 0.0
    %1398 = vmatpush.msra.mxu0 %v88
    %1399 = vmatpush.msra.mxu0 %v86
    %1400 = vmatpush.msra.mxu0 %v84
    %1401 = vmatpush.msra.mxu0 %v82
    %1402 = vmatpush.msra.mxu0 %v80
    %1403 = vmatpush.msra.mxu0 %v78
    %1404 = vmatpush.msra.mxu0 %v76
    %1405 = vmatpush.msra.mxu0 %v74
    %1406 = vmatmul.f32.gmra.mxu0 %v1368
    %v1407 = vpop.f32.mrf.mxu0
    %v1408 = vadd.f32 0.0, %v1407
    %1409 = vdwg.mxu0
    %v1410 = vadd.f32 %v1365, %v1388
    %v1411 = vadd.f32 %v1366, %v1408
    %v1412 = vxor.u32 %v1410, 2147483648
    %v1413 = vxor.u32 %v1411, 2147483648
    %v1414 = vmul.f32 %v1412, 1.442695
    %v1415 = vpow.pop %v1414
    %v1416 = vmul.f32 %v1413, 1.442695
    %v1417 = vpow.pop %v1416
    %v1418 = vadd.f32 %v1415, 1.0
    %v1419 = vadd.f32 %v1417, 1.0
    %v1420 = vrcp.pop %v1418
    %v1421 = vmul.f32 %v1418, %v1420
    %v1422 = vsub.f32 1.0, %v1421
    %v1423 = vmul.f32 %v1420, %v1422
    %v1424 = vadd.f32 %v1420, %v1423
    %vm1425 = vweird.f32 %v1418
    %vm1426 = vweird.f32 %v1420
    %vm1427 = vmor %vm1425, %vm1426
    %v1428 = vsel %vm1427, %v1420, %v1424
    %v1429 = vand.u32 2147483647, %v1418
    %vm1430 = vcmp.eq.f32.partialorder %v1429, 8.507059e+37
    %v1431 = vand.u32 %v1418, 2147483648
    %v1432 = vor.u32 1.1754944e-38, %v1431
    %v1433 = vsel %vm1430, %v1432, %v1428
    %v1434 = vmul.f32 1.0, %v1433
    %v1435 = vrcp.pop %v1419
    %v1436 = vmul.f32 %v1419, %v1435
    %v1437 = vsub.f32 1.0, %v1436
    %v1438 = vmul.f32 %v1435, %v1437
    %v1439 = vadd.f32 %v1435, %v1438
    %vm1440 = vweird.f32 %v1419
    %vm1441 = vweird.f32 %v1435
    %vm1442 = vmor %vm1440, %vm1441
    %v1443 = vsel %vm1442, %v1435, %v1439
    %v1444 = vand.u32 2147483647, %v1419
    %vm1445 = vcmp.eq.f32.partialorder %v1444, 8.507059e+37
    %v1446 = vand.u32 %v1419, 2147483648
    %v1447 = vor.u32 1.1754944e-38, %v1446
    %v1448 = vsel %vm1445, %v1447, %v1443
    %v1449 = vmul.f32 1.0, %v1448
    %v1450 = vtanh.pop %v1411
    %v1451 = vmul.f32 %v1434, %v1254
    %1453 = vrot.lane.b32.xlu0 %v1450, 64
    %v1454 = vpop.permute.xlu0 %1453
    %v1456 = vmul.f32 %v1434, %v1454
    %1458 = vrot.lane.b32.xlu0 %v1456, 64
    %v1459 = vpop.permute.xlu0 %1458
    %v1461 = vadd.f32 %v1451, %v1459
    %v1462 = vtanh.pop %v1461
    %1464 = vrot.lane.b32.xlu0 %v1462, 64
    %v1465 = vpop.permute.xlu0 %1464
    %v1467 = vmul.f32 %v1449, %v1465
    %1469 = vrot.lane.b32.xlu0 %v1361, 64
    %v1470 = vpop.permute.xlu0 %1469
    %v1472 = vsel %vm129, %v1467, %v1470
    %1473 = vmatpush.msra.mxu0 %v119
    %1474 = vmatpush.msra.mxu0 %v117
    %1475 = vmatpush.msra.mxu0 %v115
    %1476 = vmatpush.msra.mxu0 %v113
    %1477 = vmatpush.msra.mxu0 %v111
    %1478 = vmatpush.msra.mxu0 %v109
    %1479 = vmatpush.msra.mxu0 %v107
    %1480 = vmatpush.msra.mxu0 %v105
    %1481 = vmatpush.msra.mxu0 %v103
    %1482 = vmatpush.msra.mxu0 %v101
    %1483 = vmatpush.msra.mxu0 %v99
    %1484 = vmatpush.msra.mxu0 %v97
    %1485 = vmatpush.msra.mxu0 %v95
    %1486 = vmatpush.msra.mxu0 %v93
    %1487 = vmatpush.msra.mxu0 %v91
    %1488 = vmatpush.msra.mxu0 %v89
    %1489 = vmatmul.f32.gmra.mxu0 %v1472
    %v1490 = vpop.f32.mrf.mxu0
    %v1491 = vadd.f32 %v123, %v1490
    %1492 = vdwg.mxu0
    %1493 = vmatpush.msra.mxu0 %v120
    %1494 = vmatpush.msra.mxu0 %v118
    %1495 = vmatpush.msra.mxu0 %v116
    %1496 = vmatpush.msra.mxu0 %v114
    %1497 = vmatpush.msra.mxu0 %v112
    %1498 = vmatpush.msra.mxu0 %v110
    %1499 = vmatpush.msra.mxu0 %v108
    %1500 = vmatpush.msra.mxu0 %v106
    %1501 = vmatpush.msra.mxu0 %v104
    %1502 = vmatpush.msra.mxu0 %v102
    %1503 = vmatpush.msra.mxu0 %v100
    %1504 = vmatpush.msra.mxu0 %v98
    %1505 = vmatpush.msra.mxu0 %v96
    %1506 = vmatpush.msra.mxu0 %v94
    %1507 = vmatpush.msra.mxu0 %v92
    %1508 = vmatpush.msra.mxu0 %v90
    %1509 = vmatmul.f32.gmra.mxu0 %v1472
    %v1510 = vpop.f32.mrf.mxu0
    %v1511 = vadd.f32 %v124, %v1510
    %1512 = vdwg.mxu0
    %v1513 = vxor.u32 %v1491, 2147483648
    %v1514 = vxor.u32 %v1511, 2147483648
    %v1515 = vmul.f32 %v1513, 1.442695
    %v1516 = vpow.pop %v1515
    %v1517 = vmul.f32 %v1514, 1.442695
    %v1518 = vpow.pop %v1517
    %v1519 = vadd.f32 %v1516, 1.0
    %v1520 = vadd.f32 %v1518, 1.0
    %v1521 = vrcp.pop %v1519
    %v1522 = vmul.f32 %v1519, %v1521
    %v1523 = vsub.f32 1.0, %v1522
    %v1524 = vmul.f32 %v1521, %v1523
    %v1525 = vadd.f32 %v1521, %v1524
    %vm1526 = vweird.f32 %v1519
    %vm1527 = vweird.f32 %v1521
    %vm1528 = vmor %vm1526, %vm1527
    %v1529 = vsel %vm1528, %v1521, %v1525
    %v1530 = vand.u32 2147483647, %v1519
    %vm1531 = vcmp.eq.f32.partialorder %v1530, 8.507059e+37
    %v1532 = vand.u32 %v1519, 2147483648
    %v1533 = vor.u32 1.1754944e-38, %v1532
    %v1534 = vsel %vm1531, %v1533, %v1529
    %v1535 = vmul.f32 1.0, %v1534
    %v1536 = vrcp.pop %v1520
    %v1537 = vmul.f32 %v1520, %v1536
    %v1538 = vsub.f32 1.0, %v1537
    %v1539 = vmul.f32 %v1536, %v1538
    %v1540 = vadd.f32 %v1536, %v1539
    %vm1541 = vweird.f32 %v1520
    %vm1542 = vweird.f32 %v1536
    %vm1543 = vmor %vm1541, %vm1542
    %v1544 = vsel %vm1543, %v1536, %v1540
    %v1545 = vand.u32 2147483647, %v1520
    %vm1546 = vcmp.eq.f32.partialorder %v1545, 8.507059e+37
    %v1547 = vand.u32 %v1520, 2147483648
    %v1548 = vor.u32 1.1754944e-38, %v1547
    %v1549 = vsel %vm1546, %v1548, %v1544
    %v1550 = vmul.f32 1.0, %v1549
    %v1551 = vtanh.pop %v1511
    %v1552 = vmul.f32 %v1535, %v1355
    %1554 = vrot.lane.b32.xlu0 %v1551, 64
    %v1555 = vpop.permute.xlu0 %1554
    %v1557 = vmul.f32 %v1535, %v1555
    %1559 = vrot.lane.b32.xlu0 %v1557, 64
    %v1560 = vpop.permute.xlu0 %1559
    %v1562 = vadd.f32 %v1552, %v1560
    %v1563 = vtanh.pop %v1562
    %1565 = vrot.lane.b32.xlu0 %v1563, 64
    %v1566 = vpop.permute.xlu0 %1565
    %v1568 = vmul.f32 %v1550, %v1566
    %s1569 = scalar_lea.vmem [#allocation2], 48
    %1570 = vst.msk [vmem:[%s1569] sm:$0xff] %vm129, %v1568
    %s1571 = scalar_lea.vmem [#allocation4], 112
    %v1572 = vld [vmem:[%s1571] sm:$0xff]
    %v1573 = vld [vmem:[%s1571 + $0x8] sm:$0xff]
    %v1575 = vsel %vm129, %v1467, 0
    %1577 = vmatpush.msra.mxu0 0.0
    %1578 = vmatpush.msra.mxu0 0.0
    %1579 = vmatpush.msra.mxu0 0.0
    %1580 = vmatpush.msra.mxu0 0.0
    %1581 = vmatpush.msra.mxu0 0.0
    %1582 = vmatpush.msra.mxu0 0.0
    %1583 = vmatpush.msra.mxu0 0.0
    %1584 = vmatpush.msra.mxu0 0.0
    %1585 = vmatpush.msra.mxu0 %v87
    %1586 = vmatpush.msra.mxu0 %v85
    %1587 = vmatpush.msra.mxu0 %v83
    %1588 = vmatpush.msra.mxu0 %v81
    %1589 = vmatpush.msra.mxu0 %v79
    %1590 = vmatpush.msra.mxu0 %v77
    %1591 = vmatpush.msra.mxu0 %v75
    %1592 = vmatpush.msra.mxu0 %v73
    %1593 = vmatmul.f32.gmra.mxu0 %v1575
    %v1594 = vpop.f32.mrf.mxu0
    %v1595 = vadd.f32 0.0, %v1594
    %1596 = vdwg.mxu0
    %1597 = vmatpush.msra.mxu0 0.0
    %1598 = vmatpush.msra.mxu0 0.0
    %1599 = vmatpush.msra.mxu0 0.0
    %1600 = vmatpush.msra.mxu0 0.0
    %1601 = vmatpush.msra.mxu0 0.0
    %1602 = vmatpush.msra.mxu0 0.0
    %1603 = vmatpush.msra.mxu0 0.0
    %1604 = vmatpush.msra.mxu0 0.0
    %1605 = vmatpush.msra.mxu0 %v88
    %1606 = vmatpush.msra.mxu0 %v86
    %1607 = vmatpush.msra.mxu0 %v84
    %1608 = vmatpush.msra.mxu0 %v82
    %1609 = vmatpush.msra.mxu0 %v80
    %1610 = vmatpush.msra.mxu0 %v78
    %1611 = vmatpush.msra.mxu0 %v76
    %1612 = vmatpush.msra.mxu0 %v74
    %1613 = vmatmul.f32.gmra.mxu0 %v1575
    %v1614 = vpop.f32.mrf.mxu0
    %v1615 = vadd.f32 0.0, %v1614
    %1616 = vdwg.mxu0
    %v1617 = vadd.f32 %v1572, %v1595
    %v1618 = vadd.f32 %v1573, %v1615
    %v1619 = vxor.u32 %v1617, 2147483648
    %v1620 = vxor.u32 %v1618, 2147483648
    %v1621 = vmul.f32 %v1619, 1.442695
    %v1622 = vpow.pop %v1621
    %v1623 = vmul.f32 %v1620, 1.442695
    %v1624 = vpow.pop %v1623
    %v1625 = vadd.f32 %v1622, 1.0
    %v1626 = vadd.f32 %v1624, 1.0
    %v1627 = vrcp.pop %v1625
    %v1628 = vmul.f32 %v1625, %v1627
    %v1629 = vsub.f32 1.0, %v1628
    %v1630 = vmul.f32 %v1627, %v1629
    %v1631 = vadd.f32 %v1627, %v1630
    %vm1632 = vweird.f32 %v1625
    %vm1633 = vweird.f32 %v1627
    %vm1634 = vmor %vm1632, %vm1633
    %v1635 = vsel %vm1634, %v1627, %v1631
    %v1636 = vand.u32 2147483647, %v1625
    %vm1637 = vcmp.eq.f32.partialorder %v1636, 8.507059e+37
    %v1638 = vand.u32 %v1625, 2147483648
    %v1639 = vor.u32 1.1754944e-38, %v1638
    %v1640 = vsel %vm1637, %v1639, %v1635
    %v1641 = vmul.f32 1.0, %v1640
    %v1642 = vrcp.pop %v1626
    %v1643 = vmul.f32 %v1626, %v1642
    %v1644 = vsub.f32 1.0, %v1643
    %v1645 = vmul.f32 %v1642, %v1644
    %v1646 = vadd.f32 %v1642, %v1645
    %vm1647 = vweird.f32 %v1626
    %vm1648 = vweird.f32 %v1642
    %vm1649 = vmor %vm1647, %vm1648
    %v1650 = vsel %vm1649, %v1642, %v1646
    %v1651 = vand.u32 2147483647, %v1626
    %vm1652 = vcmp.eq.f32.partialorder %v1651, 8.507059e+37
    %v1653 = vand.u32 %v1626, 2147483648
    %v1654 = vor.u32 1.1754944e-38, %v1653
    %v1655 = vsel %vm1652, %v1654, %v1650
    %v1656 = vmul.f32 1.0, %v1655
    %v1657 = vtanh.pop %v1618
    %v1658 = vmul.f32 %v1641, %v1461
    %1660 = vrot.lane.b32.xlu0 %v1657, 64
    %v1661 = vpop.permute.xlu0 %1660
    %v1663 = vmul.f32 %v1641, %v1661
    %1665 = vrot.lane.b32.xlu0 %v1663, 64
    %v1666 = vpop.permute.xlu0 %1665
    %v1668 = vadd.f32 %v1658, %v1666
    %v1669 = vtanh.pop %v1668
    %1671 = vrot.lane.b32.xlu0 %v1669, 64
    %v1672 = vpop.permute.xlu0 %1671
    %v1674 = vmul.f32 %v1656, %v1672
    %1676 = vrot.lane.b32.xlu0 %v1568, 64
    %v1677 = vpop.permute.xlu0 %1676
    %v1679 = vsel %vm129, %v1674, %v1677
    %1680 = vmatpush.msra.mxu0 %v119
    %1681 = vmatpush.msra.mxu0 %v117
    %1682 = vmatpush.msra.mxu0 %v115
    %1683 = vmatpush.msra.mxu0 %v113
    %1684 = vmatpush.msra.mxu0 %v111
    %1685 = vmatpush.msra.mxu0 %v109
    %1686 = vmatpush.msra.mxu0 %v107
    %1687 = vmatpush.msra.mxu0 %v105
    %1688 = vmatpush.msra.mxu0 %v103
    %1689 = vmatpush.msra.mxu0 %v101
    %1690 = vmatpush.msra.mxu0 %v99
    %1691 = vmatpush.msra.mxu0 %v97
    %1692 = vmatpush.msra.mxu0 %v95
    %1693 = vmatpush.msra.mxu0 %v93
    %1694 = vmatpush.msra.mxu0 %v91
    %1695 = vmatpush.msra.mxu0 %v89
    %1696 = vmatmul.f32.gmra.mxu0 %v1679
    %v1697 = vpop.f32.mrf.mxu0
    %v1698 = vadd.f32 %v123, %v1697
    %1699 = vdwg.mxu0
    %1700 = vmatpush.msra.mxu0 %v120
    %1701 = vmatpush.msra.mxu0 %v118
    %1702 = vmatpush.msra.mxu0 %v116
    %1703 = vmatpush.msra.mxu0 %v114
    %1704 = vmatpush.msra.mxu0 %v112
    %1705 = vmatpush.msra.mxu0 %v110
    %1706 = vmatpush.msra.mxu0 %v108
    %1707 = vmatpush.msra.mxu0 %v106
    %1708 = vmatpush.msra.mxu0 %v104
    %1709 = vmatpush.msra.mxu0 %v102
    %1710 = vmatpush.msra.mxu0 %v100
    %1711 = vmatpush.msra.mxu0 %v98
    %1712 = vmatpush.msra.mxu0 %v96
    %1713 = vmatpush.msra.mxu0 %v94
    %1714 = vmatpush.msra.mxu0 %v92
    %1715 = vmatpush.msra.mxu0 %v90
    %1716 = vmatmul.f32.gmra.mxu0 %v1679
    %v1717 = vpop.f32.mrf.mxu0
    %v1718 = vadd.f32 %v124, %v1717
    %1719 = vdwg.mxu0
    %v1720 = vxor.u32 %v1698, 2147483648
    %v1721 = vxor.u32 %v1718, 2147483648
    %v1722 = vmul.f32 %v1720, 1.442695
    %v1723 = vpow.pop %v1722
    %v1724 = vmul.f32 %v1721, 1.442695
    %v1725 = vpow.pop %v1724
    %v1726 = vadd.f32 %v1723, 1.0
    %v1727 = vadd.f32 %v1725, 1.0
    %v1728 = vrcp.pop %v1726
    %v1729 = vmul.f32 %v1726, %v1728
    %v1730 = vsub.f32 1.0, %v1729
    %v1731 = vmul.f32 %v1728, %v1730
    %v1732 = vadd.f32 %v1728, %v1731
    %vm1733 = vweird.f32 %v1726
    %vm1734 = vweird.f32 %v1728
    %vm1735 = vmor %vm1733, %vm1734
    %v1736 = vsel %vm1735, %v1728, %v1732
    %v1737 = vand.u32 2147483647, %v1726
    %vm1738 = vcmp.eq.f32.partialorder %v1737, 8.507059e+37
    %v1739 = vand.u32 %v1726, 2147483648
    %v1740 = vor.u32 1.1754944e-38, %v1739
    %v1741 = vsel %vm1738, %v1740, %v1736
    %v1742 = vmul.f32 1.0, %v1741
    %v1743 = vrcp.pop %v1727
    %v1744 = vmul.f32 %v1727, %v1743
    %v1745 = vsub.f32 1.0, %v1744
    %v1746 = vmul.f32 %v1743, %v1745
    %v1747 = vadd.f32 %v1743, %v1746
    %vm1748 = vweird.f32 %v1727
    %vm1749 = vweird.f32 %v1743
    %vm1750 = vmor %vm1748, %vm1749
    %v1751 = vsel %vm1750, %v1743, %v1747
    %v1752 = vand.u32 2147483647, %v1727
    %vm1753 = vcmp.eq.f32.partialorder %v1752, 8.507059e+37
    %v1754 = vand.u32 %v1727, 2147483648
    %v1755 = vor.u32 1.1754944e-38, %v1754
    %v1756 = vsel %vm1753, %v1755, %v1751
    %v1757 = vmul.f32 1.0, %v1756
    %v1758 = vtanh.pop %v1718
    %v1759 = vmul.f32 %v1742, %v1562
    %1761 = vrot.lane.b32.xlu0 %v1758, 64
    %v1762 = vpop.permute.xlu0 %1761
    %v1764 = vmul.f32 %v1742, %v1762
    %1766 = vrot.lane.b32.xlu0 %v1764, 64
    %v1767 = vpop.permute.xlu0 %1766
    %v1769 = vadd.f32 %v1759, %v1767
    %v1770 = vtanh.pop %v1769
    %1772 = vrot.lane.b32.xlu0 %v1770, 64
    %v1773 = vpop.permute.xlu0 %1772
    %v1775 = vmul.f32 %v1757, %v1773
    %s1776 = scalar_lea.vmem [#allocation2], 56
    %1777 = vst.msk [vmem:[%s1776] sm:$0xff] %vm129, %v1775
    %v1778 = vld [vmem:[#allocation2] sm:$0xff]
    %v1779 = vld [vmem:[#allocation2 + $0x8] sm:$0xff]
    %v1780 = vld [vmem:[#allocation2 + $0x10] sm:$0xff]
    %v1781 = vld [vmem:[#allocation2 + $0x18] sm:$0xff]
    %v1782 = vld [vmem:[#allocation2 + $0x20] sm:$0xff]
    %v1783 = vld [vmem:[#allocation2 + $0x28] sm:$0xff]
    %v1784 = vld [vmem:[#allocation2 + $0x30] sm:$0xff]
    %v1785 = vld [vmem:[#allocation2 + $0x38] sm:$0xff]
    %v1786 = vld [vmem:[%s4] sm:$0x1]
    %v1788 = vperm.slane %v1786, 0
    %v1790 = vmul.f32 %v1778, %v1788
    %v1791 = vmul.f32 %v1779, %v1788
    %v1792 = vmul.f32 %v1780, %v1788
    %v1793 = vmul.f32 %v1781, %v1788
    %v1794 = vmul.f32 %v1782, %v1788
    %v1795 = vmul.f32 %v1783, %v1788
    %v1796 = vmul.f32 %v1784, %v1788
    %v1797 = vmul.f32 %v1785, %v1788
    %v1798 = vsel %vm129, %v1790, 0.0
    %1799 = vadd.xlane.f32.xlu0 %v1798
    %v1800 = vpop.xlane.xlu0 %1799
    %v1801 = vsel %vm129, %v1791, 0.0
    %1802 = vadd.xlane.f32.xlu0 %v1801
    %v1803 = vpop.xlane.xlu0 %1802
    %v1804 = vsel %vm129, %v1792, 0.0
    %1805 = vadd.xlane.f32.xlu0 %v1804
    %v1806 = vpop.xlane.xlu0 %1805
    %v1807 = vsel %vm129, %v1793, 0.0
    %1808 = vadd.xlane.f32.xlu0 %v1807
    %v1809 = vpop.xlane.xlu0 %1808
    %v1810 = vsel %vm129, %v1794, 0.0
    %1811 = vadd.xlane.f32.xlu0 %v1810
    %v1812 = vpop.xlane.xlu0 %1811
    %v1813 = vsel %vm129, %v1795, 0.0
    %1814 = vadd.xlane.f32.xlu0 %v1813
    %v1815 = vpop.xlane.xlu0 %1814
    %v1816 = vsel %vm129, %v1796, 0.0
    %1817 = vadd.xlane.f32.xlu0 %v1816
    %v1818 = vpop.xlane.xlu0 %1817
    %v1819 = vsel %vm129, %v1797, 0.0
    %1820 = vadd.xlane.f32.xlu0 %v1819
    %v1821 = vpop.xlane.xlu0 %1820
    %v1822 = vld [vmem:[#allocation3] sm:$0x1]
    %v1824 = vperm.slane %v1822, 0
    %1825 = vset.pattern.permute.xlu0 0
    %1826 = vperm.xlu0 %1825, %v1824
    %v1827 = vpop.permute.xlu0 %1826
    %v1829 = vadd.f32 %v1800, %v1827
    %v1830 = vadd.f32 %v1803, %v1827
    %v1831 = vadd.f32 %v1806, %v1827
    %v1832 = vadd.f32 %v1809, %v1827
    %v1833 = vadd.f32 %v1812, %v1827
    %v1834 = vadd.f32 %v1815, %v1827
    %v1835 = vadd.f32 %v1818, %v1827
    %v1836 = vadd.f32 %v1821, %v1827
    %v1845 = vlaneseq
    %v1846 = vand.u32 %v1845, 127
    %v1847 = vperm.slane %v1829, %v1846
    %v1848 = vperm.slane %v1830, %v1846
    %v1849 = vperm.slane %v1831, %v1846
    %v1850 = vperm.slane %v1832, %v1846
    %v1851 = vperm.slane %v1833, %v1846
    %v1852 = vperm.slane %v1834, %v1846
    %v1853 = vperm.slane %v1835, %v1846
    %v1854 = vperm.slane %v1836, %v1846
    %vm1855 = vcmask 1041409
    %v1856 = vsel %vm1855, %v1848, %v1847
    %vm1857 = vcmask 1042434
    %v1858 = vsel %vm1857, %v1849, %v1856
    %vm1859 = vcmask 1043459
    %v1860 = vsel %vm1859, %v1850, %v1858
    %vm1861 = vcmask 1044484
    %v1862 = vsel %vm1861, %v1851, %v1860
    %vm1863 = vcmask 1045509
    %v1864 = vsel %vm1863, %v1852, %v1862
    %vm1865 = vcmask 1046534
    %v1866 = vsel %vm1865, %v1853, %v1864
    %vm1867 = vcmask 1047559
    %v1868 = vsel %vm1867, %v1854, %v1866
    %vm1870 = vcmask 64512
    %1871 = vst.msk [vmem:[#allocation10] sm:$0xff] %vm1870, %v1868
    // Predicated region
    $region38: #{tpu_custom_call.1} parent=1 // pred_check
      _
    $region39: #{tpu_custom_call.1} parent=1 // pred_check_branch
      %1873 = sbr.rel (0) target = $region41
    $region40: #{tpu_custom_call.1} parent=1 // pred_region
      %1875 = vsyncadd [#allocation6], 0
      %s1877 = sshll.u32 [#allocation10], 4
      %s1878 = int_to_ptr.vmem [resolvable:$true] %s1877
      %s1879 = sshll.u32 %s6, 4
      %s1880 = int_to_ptr.hbm [resolvable:$true] %s1879
      %1882 = dma.vmem_to_hbm [thread:$0]  %s1878, 128, %s1880, [#allocation6]
    $region41: #{tpu_custom_call.1} parent=1 // pred_fallthru
      _
    // Predicated region
    $region42: #{tpu_custom_call.1} parent=1 // pred_check
      _
    $region43: #{tpu_custom_call.1} parent=1 // pred_check_branch
      %1884 = sbr.rel (0) target = $region45
    $region44: #{tpu_custom_call.1} parent=1 // pred_region
      %1886 = dma.done [#allocation6], 128
    $region45: #{tpu_custom_call.1} parent=1 // pred_fallthru
      _
    %1887 = vsyncpa [#allocation5], 1
    %1888 = vsyncpa [#allocation8], 1
    %1889 = vsyncpa [#allocation6], 1

</llo_original>
